<compile_context>
chip_gen: v7x
topology: tpu7x:2x2x1
jax: 0.10.0
libtpu: 0.0.40
codegen_flags: <defaults>
</compile_context>

<pallas_src>
import math

import jax
import jax.numpy as jnp
from jax.experimental import pallas as pl
from jax.experimental.pallas import tpu as pltpu


# ----------------------------------------------------------------------------
# Kernel 1: fused Q/K/V projection (three matmuls + bias epilogue, one launch)
# ----------------------------------------------------------------------------
def _qkv_proj_kernel(qin_ref, kvin_ref,
                     wq_ref, bq_ref, wk_ref, bk_ref, wv_ref, bv_ref,
                     qo_ref, ko_ref, vo_ref):
    xq = qin_ref[...]         # (tl, C) bf16
    xkv = kvin_ref[...]       # (tl, C) bf16
    qo_ref[...] = (jnp.dot(xq, wq_ref[...], preferred_element_type=jnp.float32)
                   + bq_ref[...]).astype(qo_ref.dtype)
    ko_ref[...] = (jnp.dot(xkv, wk_ref[...], preferred_element_type=jnp.float32)
                   + bk_ref[...]).astype(ko_ref.dtype)
    vo_ref[...] = (jnp.dot(xkv, wv_ref[...], preferred_element_type=jnp.float32)
                   + bv_ref[...]).astype(vo_ref.dtype)


def qkv_projection(qf, kvf, p, *, row_tile=256):
    """qf, kvf: (B, L, C) float32 -> q, k, v: (B, L, C) bfloat16."""
    B, L, C = qf.shape
    # Pick the largest row tile that divides L (bigger tiles amortize grid overhead).
    tl = L
    for cand in (row_tile, 128):
        if L % cand == 0:
            tl = cand
            break
    bf = jnp.bfloat16
    args = (qf.astype(bf), kvf.astype(bf),
            p['wq'].astype(bf), p['bq'].reshape(1, C).astype(jnp.float32),
            p['wk'].astype(bf), p['bk'].reshape(1, C).astype(jnp.float32),
            p['wv'].astype(bf), p['bv'].reshape(1, C).astype(jnp.float32))

    row_spec = pl.BlockSpec((None, tl, C), lambda b, i: (b, i, 0))
    w_spec = pl.BlockSpec((C, C), lambda b, i: (0, 0))
    b_spec = pl.BlockSpec((1, C), lambda b, i: (0, 0))
    out_sd = jax.ShapeDtypeStruct((B, L, C), bf)

    flops = 3 * 2 * B * L * C * C
    bytes_acc = 2 * (2 * B * L * C + 3 * C * C + 3 * B * L * C) + 4 * 3 * C

    return pl.pallas_call(
        _qkv_proj_kernel,
        out_shape=(out_sd, out_sd, out_sd),
        grid_spec=pltpu.PrefetchScalarGridSpec(
            num_scalar_prefetch=0,
            grid=(B, L // tl),
            in_specs=[row_spec, row_spec,
                      w_spec, b_spec, w_spec, b_spec, w_spec, b_spec],
            out_specs=[row_spec, row_spec, row_spec],
        ),
        compiler_params=pltpu.CompilerParams(
            dimension_semantics=("parallel", "parallel")),
        cost_estimate=pl.CostEstimate(flops=flops, transcendentals=0,
                                      bytes_accessed=bytes_acc),
    )(*args)


# ----------------------------------------------------------------------------
# Kernel 2: flash attention (online softmax, scores never touch HBM)
# ----------------------------------------------------------------------------
def _make_flash_kernel(scale):
    def kernel(q_ref, k_ref, v_ref, o_ref, m_sc, l_sc, acc_sc):
        ki = pl.program_id(2)

        @pl.when(ki == 0)
        def _init():
            m_sc[...] = jnp.full_like(m_sc, -jnp.inf)
            l_sc[...] = jnp.zeros_like(l_sc)
            acc_sc[...] = jnp.zeros_like(acc_sc)

        q = q_ref[...]                                 # (tq, C) bf16
        k = k_ref[...]                                 # (tk, C) bf16
        s = jax.lax.dot_general(q, k, (((1,), (1,)), ((), ())),
                                preferred_element_type=jnp.float32) * scale
        m_prev = m_sc[...]
        m_new = jnp.maximum(m_prev, s.max(axis=-1, keepdims=True))
        alpha = jnp.exp(m_prev - m_new)
        probs = jnp.exp(s - m_new)
        l_sc[...] = alpha * l_sc[...] + probs.sum(axis=-1, keepdims=True)
        acc_sc[...] = alpha * acc_sc[...] + jnp.dot(
            probs.astype(v_ref.dtype), v_ref[...],
            preferred_element_type=jnp.float32)
        m_sc[...] = m_new

        @pl.when(ki == pl.num_programs(2) - 1)
        def _fini():
            inv_l = pl.reciprocal(l_sc[...], approx=True)
            o_ref[...] = (acc_sc[...] * inv_l).astype(o_ref.dtype)
    return kernel


def flash_attention(q, k, v, scale, *, q_tile=128, kv_tile=128):
    """q, k, v: (B, L, C) bfloat16 -> (B, L, C) float32."""
    B, L, C = q.shape
    tq = q_tile if L % q_tile == 0 else L
    tk = kv_tile if L % kv_tile == 0 else L

    flops = 2 * 2 * B * L * L * C
    bytes_acc = 2 * 3 * B * L * C + 4 * B * L * C

    return pl.pallas_call(
        _make_flash_kernel(scale),
        out_shape=jax.ShapeDtypeStruct((B, L, C), jnp.float32),
        grid_spec=pltpu.PrefetchScalarGridSpec(
            num_scalar_prefetch=0,
            grid=(B, L // tq, L // tk),
            in_specs=[
                pl.BlockSpec((None, tq, C), lambda b, qi, ki: (b, qi, 0)),
                pl.BlockSpec((None, tk, C), lambda b, qi, ki: (b, ki, 0)),
                pl.BlockSpec((None, tk, C), lambda b, qi, ki: (b, ki, 0)),
            ],
            out_specs=pl.BlockSpec((None, tq, C), lambda b, qi, ki: (b, qi, 0)),
            scratch_shapes=[
                pltpu.VMEM((tq, 1), jnp.float32),   # running max
                pltpu.VMEM((tq, 1), jnp.float32),   # running denom
                pltpu.VMEM((tq, C), jnp.float32),   # output accumulator
            ],
        ),
        compiler_params=pltpu.CompilerParams(
            dimension_semantics=("parallel", "parallel", "arbitrary")),
        cost_estimate=pl.CostEstimate(flops=flops, transcendentals=B * L * L,
                                      bytes_accessed=bytes_acc),
    )(q, k, v)


# ----------------------------------------------------------------------------
# Pure-JAX reference (same bf16-operand / f32-accumulation strategy)
# ----------------------------------------------------------------------------
def _ref_attention(qf, kvf, p, scale):
    bf = jnp.bfloat16
    q = (jnp.einsum('blc,cd->bld', qf.astype(bf), p['wq'].astype(bf),
                    preferred_element_type=jnp.float32) + p['bq']).astype(bf)
    k = (jnp.einsum('blc,cd->bld', kvf.astype(bf), p['wk'].astype(bf),
                    preferred_element_type=jnp.float32) + p['bk']).astype(bf)
    v = (jnp.einsum('blc,cd->bld', kvf.astype(bf), p['wv'].astype(bf),
                    preferred_element_type=jnp.float32) + p['bv']).astype(bf)
    s = jnp.einsum('blc,bmc->blm', q, k,
                   preferred_element_type=jnp.float32) * scale
    probs = jax.nn.softmax(s, axis=-1)
    return jnp.einsum('blm,bmc->blc', probs.astype(bf), v,
                      preferred_element_type=jnp.float32)


# ----------------------------------------------------------------------------
# Forward
# ----------------------------------------------------------------------------
def attention_fuse_forward(query, key_value, params, *, use_pallas=True):
    T, B, C, H, W = query.shape
    L = T * H * W
    scale = 1.0 / math.sqrt(C)

    # 'T B C H W -> B (T H W) C'
    qf = jnp.transpose(query, (1, 0, 3, 4, 2)).reshape(B, L, C)
    kvf = jnp.transpose(key_value, (1, 0, 3, 4, 2)).reshape(B, L, C)

    if use_pallas:
        q, k, v = qkv_projection(qf, kvf, params)
        out = flash_attention(q, k, v, scale)
    else:
        out = _ref_attention(qf, kvf, params, scale)

    out = out.astype(jnp.float32)
    # 'B (T H W) C -> T B C H W'
    return out.reshape(B, T, H, W, C).transpose(1, 0, 4, 2, 3)


forward = jax.jit(attention_fuse_forward, static_argnames=('use_pallas',))


# ----------------------------------------------------------------------------
# Deterministic synthetic parameters (nn.Linear(d_model, d_model) x 3)
# ----------------------------------------------------------------------------
def init_params(key, d_model):
    ks = jax.random.split(key, 6)
    std = 1.0 / math.sqrt(d_model)
    return {
        'wq': std * jax.random.normal(ks[0], (d_model, d_model), jnp.float32),
        'bq': std * jax.random.normal(ks[1], (d_model,), jnp.float32),
        'wk': std * jax.random.normal(ks[2], (d_model, d_model), jnp.float32),
        'bk': std * jax.random.normal(ks[3], (d_model,), jnp.float32),
        'wv': std * jax.random.normal(ks[4], (d_model, d_model), jnp.float32),
        'bv': std * jax.random.normal(ks[5], (d_model,), jnp.float32),
    }


if __name__ == "__main__":
    T, B, C, H, W = 2, 2, 128, 8, 8          # d_model = C = 128, L = T*H*W = 128
    key = jax.random.PRNGKey(0)
    kq, kk, kp = jax.random.split(key, 3)
    query = jax.random.normal(kq, (T, B, C, H, W), jnp.float32)
    key_value = jax.random.normal(kk, (T, B, C, H, W), jnp.float32)
    params = init_params(kp, C)

    out = jax.block_until_ready(forward(query, key_value, params, use_pallas=True))
    ref = jax.block_until_ready(forward(query, key_value, params, use_pallas=False))

    assert out.shape == (T, B, C, H, W)
    err = float(jnp.max(jnp.abs(out - ref)))
    assert err < 2e-2, f"Pallas vs JAX reference mismatch: {err}"
    print("KERNEL_OK")
</pallas_src>

<mosaic_0001>
module attributes {stable_mosaic.version = 11 : i64} {
  func.func @kernel(%arg0: i32, %arg1: i32, %arg2: i32, %arg3: memref<1x128x128xbf16, #tpu.memory_space<vmem>>, %arg4: memref<1x128x128xbf16, #tpu.memory_space<vmem>>, %arg5: memref<1x128x128xbf16, #tpu.memory_space<vmem>>, %arg6: memref<1x128x128xf32, #tpu.memory_space<vmem>>, %arg7: memref<128x1xf32, #tpu.memory_space<vmem>>, %arg8: memref<128x1xf32, #tpu.memory_space<vmem>>, %arg9: memref<128x128xf32, #tpu.memory_space<vmem>>) attributes {dimension_semantics = [#tpu.dimension_semantics<parallel>, #tpu.dimension_semantics<parallel>, #tpu.dimension_semantics<arbitrary>], iteration_bounds = array<i64: 2, 1, 1>, scalar_prefetch = 0 : i64, scratch_operands = 3 : i64, tpu.core_type = #tpu.core_type<tc>, window_params = [{transform_indices = @transform_0, window_bounds = array<i64: 1, 128, 128>}, {transform_indices = @transform_1, window_bounds = array<i64: 1, 128, 128>}, {transform_indices = @transform_2, window_bounds = array<i64: 1, 128, 128>}, {transform_indices = @transform_3, window_bounds = array<i64: 1, 128, 128>}]} {
    %c0_i32 = arith.constant 0 : i32
    %0 = arith.cmpi eq, %arg2, %c0_i32 : i32
    %1 = arith.extui %0 : i1 to i32
    %c0_i32_0 = arith.constant 0 : i32
    %2 = arith.cmpi ne, %1, %c0_i32_0 : i32
    scf.if %2 {
      %cst_27 = arith.constant 0xFF800000 : f32
      %38 = vector.broadcast %cst_27 : f32 to vector<128x1xf32>
      %c0_28 = arith.constant 0 : index
      %c0_29 = arith.constant 0 : index
      %39 = vector.load %arg7[%c0_28, %c0_29] : memref<128x1xf32, #tpu.memory_space<vmem>>, vector<128x1xf32>
      tpu.vector_store %arg7[%c0_28, %c0_29], %38 {strides = array<i32>} : memref<128x1xf32, #tpu.memory_space<vmem>>, vector<128x1xf32>,
      %cst_30 = arith.constant 0.000000e+00 : f32
      %40 = vector.broadcast %cst_30 : f32 to vector<128x1xf32>
      %c0_31 = arith.constant 0 : index
      %c0_32 = arith.constant 0 : index
      %41 = vector.load %arg8[%c0_31, %c0_32] : memref<128x1xf32, #tpu.memory_space<vmem>>, vector<128x1xf32>
      tpu.vector_store %arg8[%c0_31, %c0_32], %40 {strides = array<i32>} : memref<128x1xf32, #tpu.memory_space<vmem>>, vector<128x1xf32>,
      %cst_33 = arith.constant 0.000000e+00 : f32
      %42 = vector.broadcast %cst_33 : f32 to vector<128x128xf32>
      %c0_34 = arith.constant 0 : index
      %c0_35 = arith.constant 0 : index
      %43 = vector.load %arg9[%c0_34, %c0_35] : memref<128x128xf32, #tpu.memory_space<vmem>>, vector<128x128xf32>
      tpu.vector_store %arg9[%c0_34, %c0_35], %42 {strides = array<i32>} : memref<128x128xf32, #tpu.memory_space<vmem>>, vector<128x128xf32>,
    } else {
    }
    %c0 = arith.constant 0 : index
    %c0_1 = arith.constant 0 : index
    %c0_2 = arith.constant 0 : index
    %3 = vector.load %arg3[%c0, %c0_1, %c0_2] : memref<1x128x128xbf16, #tpu.memory_space<vmem>>, vector<1x128x128xbf16>
    %4 = vector.shape_cast %3 : vector<1x128x128xbf16> to vector<128x128xbf16>
    %c0_3 = arith.constant 0 : index
    %c0_4 = arith.constant 0 : index
    %c0_5 = arith.constant 0 : index
    %5 = vector.load %arg4[%c0_3, %c0_4, %c0_5] : memref<1x128x128xbf16, #tpu.memory_space<vmem>>, vector<1x128x128xbf16>
    %6 = vector.shape_cast %5 : vector<1x128x128xbf16> to vector<128x128xbf16>
    %cst = arith.constant dense<0.000000e+00> : vector<128x128xf32>
    %7 = tpu.matmul %4, %6, %cst {dimension_numbers = #tpu.dot_dimension_numbers<[1], [1], [0], [0], [0, 0, 1, 0], [], []>} : vector<128x128xbf16>, vector<128x128xbf16>, vector<128x128xf32> -> vector<128x128xf32>
    %cst_6 = arith.constant 0.0883883461 : f32
    %8 = vector.broadcast %cst_6 : f32 to vector<128x128xf32>
    %9 = arith.mulf %7, %8 : vector<128x128xf32>
    %c0_7 = arith.constant 0 : index
    %c0_8 = arith.constant 0 : index
    %10 = vector.load %arg7[%c0_7, %c0_8] : memref<128x1xf32, #tpu.memory_space<vmem>>, vector<128x1xf32>
    %cst_9 = arith.constant dense<0xFF800000> : vector<128xf32>
    %11 = vector.multi_reduction <maximumf>, %9, %cst_9 [1] : vector<128x128xf32> to vector<128xf32>
    %12 = vector.shape_cast %11 : vector<128xf32> to vector<128x1xf32>
    %13 = arith.maximumf %10, %12 : vector<128x1xf32>
    %14 = arith.subf %10, %13 : vector<128x1xf32>
    %15 = math.exp %14 : vector<128x1xf32>
    %16 = vector.broadcast %13 : vector<128x1xf32> to vector<128x128xf32>
    %17 = arith.subf %9, %16 : vector<128x128xf32>
    %18 = math.exp %17 : vector<128x128xf32>
    %c0_10 = arith.constant 0 : index
    %c0_11 = arith.constant 0 : index
    %19 = vector.load %arg8[%c0_10, %c0_11] : memref<128x1xf32, #tpu.memory_space<vmem>>, vector<128x1xf32>
    %20 = arith.mulf %15, %19 : vector<128x1xf32>
    %cst_12 = arith.constant dense<0.000000e+00> : vector<128xf32>
    %21 = vector.multi_reduction <add>, %18, %cst_12 [1] : vector<128x128xf32> to vector<128xf32>
    %22 = vector.shape_cast %21 : vector<128xf32> to vector<128x1xf32>
    %23 = arith.addf %20, %22 : vector<128x1xf32>
    %c0_13 = arith.constant 0 : index
    %c0_14 = arith.constant 0 : index
    %24 = vector.load %arg8[%c0_13, %c0_14] : memref<128x1xf32, #tpu.memory_space<vmem>>, vector<128x1xf32>
    tpu.vector_store %arg8[%c0_13, %c0_14], %23 {strides = array<i32>} : memref<128x1xf32, #tpu.memory_space<vmem>>, vector<128x1xf32>,
    %c0_15 = arith.constant 0 : index
    %c0_16 = arith.constant 0 : index
    %25 = vector.load %arg9[%c0_15, %c0_16] : memref<128x128xf32, #tpu.memory_space<vmem>>, vector<128x128xf32>
    %26 = vector.broadcast %15 : vector<128x1xf32> to vector<128x128xf32>
    %27 = arith.mulf %26, %25 : vector<128x128xf32>
    %28 = arith.truncf %18 : vector<128x128xf32> to vector<128x128xbf16>
    %c0_17 = arith.constant 0 : index
    %c0_18 = arith.constant 0 : index
    %c0_19 = arith.constant 0 : index
    %29 = vector.load %arg5[%c0_17, %c0_18, %c0_19] : memref<1x128x128xbf16, #tpu.memory_space<vmem>>, vector<1x128x128xbf16>
    %30 = vector.shape_cast %29 : vector<1x128x128xbf16> to vector<128x128xbf16>
    %cst_20 = arith.constant dense<0.000000e+00> : vector<128x128xf32>
    %31 = tpu.matmul %28, %30, %cst_20 {dimension_numbers = #tpu.dot_dimension_numbers<[1], [0], [0], [1], [0, 0, 1, 1], [], []>} : vector<128x128xbf16>, vector<128x128xbf16>, vector<128x128xf32> -> vector<128x128xf32>
    %32 = arith.addf %27, %31 : vector<128x128xf32>
    %c0_21 = arith.constant 0 : index
    %c0_22 = arith.constant 0 : index
    %33 = vector.load %arg9[%c0_21, %c0_22] : memref<128x128xf32, #tpu.memory_space<vmem>>, vector<128x128xf32>
    tpu.vector_store %arg9[%c0_21, %c0_22], %32 {strides = array<i32>} : memref<128x128xf32, #tpu.memory_space<vmem>>, vector<128x128xf32>,
    %c0_23 = arith.constant 0 : index
    %c0_24 = arith.constant 0 : index
    %34 = vector.load %arg7[%c0_23, %c0_24] : memref<128x1xf32, #tpu.memory_space<vmem>>, vector<128x1xf32>
    tpu.vector_store %arg7[%c0_23, %c0_24], %13 {strides = array<i32>} : memref<128x1xf32, #tpu.memory_space<vmem>>, vector<128x1xf32>,
    %c0_i32_25 = arith.constant 0 : i32
    %35 = arith.cmpi eq, %arg2, %c0_i32_25 : i32
    %36 = arith.extui %35 : i1 to i32
    %c0_i32_26 = arith.constant 0 : i32
    %37 = arith.cmpi ne, %36, %c0_i32_26 : i32
    scf.if %37 {
      %c0_27 = arith.constant 0 : index
      %c0_28 = arith.constant 0 : index
      %38 = vector.load %arg8[%c0_27, %c0_28] : memref<128x1xf32, #tpu.memory_space<vmem>>, vector<128x1xf32>
      %39 = tpu.reciprocal %38 {approx = true} : vector<128x1xf32> -> vector<128x1xf32>
      %c0_29 = arith.constant 0 : index
      %c0_30 = arith.constant 0 : index
      %40 = vector.load %arg9[%c0_29, %c0_30] : memref<128x128xf32, #tpu.memory_space<vmem>>, vector<128x128xf32>
      %41 = vector.broadcast %39 : vector<128x1xf32> to vector<128x128xf32>
      %42 = arith.mulf %40, %41 : vector<128x128xf32>
      %c0_31 = arith.constant 0 : index
      %c0_32 = arith.constant 0 : index
      %c0_33 = arith.constant 0 : index
      %43 = vector.load %arg6[%c0_31, %c0_32, %c0_33] : memref<1x128x128xf32, #tpu.memory_space<vmem>>, vector<1x128x128xf32>
      %44 = vector.shape_cast %43 : vector<1x128x128xf32> to vector<128x128xf32>
      %45 = vector.shape_cast %42 : vector<128x128xf32> to vector<1x128x128xf32>
      tpu.vector_store %arg6[%c0_31, %c0_32, %c0_33], %45 {strides = array<i32>} : memref<1x128x128xf32, #tpu.memory_space<vmem>>, vector<1x128x128xf32>,
    } else {
    }
    return
  }
  func.func @transform_0(%arg0: i32, %arg1: i32, %arg2: i32) -> (i32, i32, i32) {
    %c0_i32 = arith.constant 0 : i32
    %c0_i32_0 = arith.constant 0 : i32
    return %arg0, %arg1, %c0_i32 : i32, i32, i32
  }
  func.func @transform_1(%arg0: i32, %arg1: i32, %arg2: i32) -> (i32, i32, i32) {
    %c0_i32 = arith.constant 0 : i32
    %c0_i32_0 = arith.constant 0 : i32
    return %arg0, %arg2, %c0_i32 : i32, i32, i32
  }
  func.func @transform_2(%arg0: i32, %arg1: i32, %arg2: i32) -> (i32, i32, i32) {
    %c0_i32 = arith.constant 0 : i32
    %c0_i32_0 = arith.constant 0 : i32
    return %arg0, %arg2, %c0_i32 : i32, i32, i32
  }
  func.func @transform_3(%arg0: i32, %arg1: i32, %arg2: i32) -> (i32, i32, i32) {
    %c0_i32 = arith.constant 0 : i32
    %c0_i32_0 = arith.constant 0 : i32
    return %arg0, %arg1, %c0_i32 : i32, i32, i32
  }
}

module attributes {stable_mosaic.version = 11 : i64} {
  func.func @_qkv_proj_kernel(%arg0: i32, %arg1: i32, %arg2: memref<1x128x128xbf16, #tpu.memory_space<vmem>>, %arg3: memref<1x128x128xbf16, #tpu.memory_space<vmem>>, %arg4: memref<128x128xbf16, #tpu.memory_space<vmem>>, %arg5: memref<1x128xf32, #tpu.memory_space<vmem>>, %arg6: memref<128x128xbf16, #tpu.memory_space<vmem>>, %arg7: memref<1x128xf32, #tpu.memory_space<vmem>>, %arg8: memref<128x128xbf16, #tpu.memory_space<vmem>>, %arg9: memref<1x128xf32, #tpu.memory_space<vmem>>, %arg10: memref<1x128x128xbf16, #tpu.memory_space<vmem>>, %arg11: memref<1x128x128xbf16, #tpu.memory_space<vmem>>, %arg12: memref<1x128x128xbf16, #tpu.memory_space<vmem>>) attributes {dimension_semantics = [#tpu.dimension_semantics<parallel>, #tpu.dimension_semantics<parallel>], iteration_bounds = array<i64: 2, 1>, scalar_prefetch = 0 : i64, scratch_operands = 0 : i64, tpu.core_type = #tpu.core_type<tc>, window_params = [{transform_indices = @transform_0, window_bounds = array<i64: 1, 128, 128>}, {transform_indices = @transform_1, window_bounds = array<i64: 1, 128, 128>}, {pipeline_mode = #tpu.pipeline_mode<synchronous>, transform_indices = @transform_2, window_bounds = array<i64: 128, 128>}, {pipeline_mode = #tpu.pipeline_mode<synchronous>, transform_indices = @transform_3, window_bounds = array<i64: 1, 128>}, {pipeline_mode = #tpu.pipeline_mode<synchronous>, transform_indices = @transform_4, window_bounds = array<i64: 128, 128>}, {pipeline_mode = #tpu.pipeline_mode<synchronous>, transform_indices = @transform_5, window_bounds = array<i64: 1, 128>}, {pipeline_mode = #tpu.pipeline_mode<synchronous>, transform_indices = @transform_6, window_bounds = array<i64: 128, 128>}, {pipeline_mode = #tpu.pipeline_mode<synchronous>, transform_indices = @transform_7, window_bounds = array<i64: 1, 128>}, {transform_indices = @transform_8, window_bounds = array<i64: 1, 128, 128>}, {transform_indices = @transform_9, window_bounds = array<i64: 1, 128, 128>}, {transform_indices = @transform_10, window_bounds = array<i64: 1, 128, 128>}]} {
    %c0 = arith.constant 0 : index
    %c0_0 = arith.constant 0 : index
    %c0_1 = arith.constant 0 : index
    %0 = vector.load %arg2[%c0, %c0_0, %c0_1] : memref<1x128x128xbf16, #tpu.memory_space<vmem>>, vector<1x128x128xbf16>
    %1 = vector.shape_cast %0 : vector<1x128x128xbf16> to vector<128x128xbf16>
    %c0_2 = arith.constant 0 : index
    %c0_3 = arith.constant 0 : index
    %c0_4 = arith.constant 0 : index
    %2 = vector.load %arg3[%c0_2, %c0_3, %c0_4] : memref<1x128x128xbf16, #tpu.memory_space<vmem>>, vector<1x128x128xbf16>
    %3 = vector.shape_cast %2 : vector<1x128x128xbf16> to vector<128x128xbf16>
    %c0_5 = arith.constant 0 : index
    %c0_6 = arith.constant 0 : index
    %4 = vector.load %arg4[%c0_5, %c0_6] : memref<128x128xbf16, #tpu.memory_space<vmem>>, vector<128x128xbf16>
    %cst = arith.constant dense<0.000000e+00> : vector<128x128xf32>
    %5 = tpu.matmul %1, %4, %cst {dimension_numbers = #tpu.dot_dimension_numbers<[1], [0], [0], [1], [0, 0, 1, 1], [], []>} : vector<128x128xbf16>, vector<128x128xbf16>, vector<128x128xf32> -> vector<128x128xf32>
    %c0_7 = arith.constant 0 : index
    %c0_8 = arith.constant 0 : index
    %6 = vector.load %arg5[%c0_7, %c0_8] : memref<1x128xf32, #tpu.memory_space<vmem>>, vector<1x128xf32>
    %7 = vector.broadcast %6 : vector<1x128xf32> to vector<128x128xf32>
    %8 = arith.addf %5, %7 : vector<128x128xf32>
    %9 = arith.truncf %8 : vector<128x128xf32> to vector<128x128xbf16>
    %c0_9 = arith.constant 0 : index
    %c0_10 = arith.constant 0 : index
    %c0_11 = arith.constant 0 : index
    %10 = vector.load %arg10[%c0_9, %c0_10, %c0_11] : memref<1x128x128xbf16, #tpu.memory_space<vmem>>, vector<1x128x128xbf16>
    %11 = vector.shape_cast %10 : vector<1x128x128xbf16> to vector<128x128xbf16>
    %12 = vector.shape_cast %9 : vector<128x128xbf16> to vector<1x128x128xbf16>
    tpu.vector_store %arg10[%c0_9, %c0_10, %c0_11], %12 {strides = array<i32>} : memref<1x128x128xbf16, #tpu.memory_space<vmem>>, vector<1x128x128xbf16>,
    %c0_12 = arith.constant 0 : index
    %c0_13 = arith.constant 0 : index
    %13 = vector.load %arg6[%c0_12, %c0_13] : memref<128x128xbf16, #tpu.memory_space<vmem>>, vector<128x128xbf16>
    %cst_14 = arith.constant dense<0.000000e+00> : vector<128x128xf32>
    %14 = tpu.matmul %3, %13, %cst_14 {dimension_numbers = #tpu.dot_dimension_numbers<[1], [0], [0], [1], [0, 0, 1, 1], [], []>} : vector<128x128xbf16>, vector<128x128xbf16>, vector<128x128xf32> -> vector<128x128xf32>
    %c0_15 = arith.constant 0 : index
    %c0_16 = arith.constant 0 : index
    %15 = vector.load %arg7[%c0_15, %c0_16] : memref<1x128xf32, #tpu.memory_space<vmem>>, vector<1x128xf32>
    %16 = vector.broadcast %15 : vector<1x128xf32> to vector<128x128xf32>
    %17 = arith.addf %14, %16 : vector<128x128xf32>
    %18 = arith.truncf %17 : vector<128x128xf32> to vector<128x128xbf16>
    %c0_17 = arith.constant 0 : index
    %c0_18 = arith.constant 0 : index
    %c0_19 = arith.constant 0 : index
    %19 = vector.load %arg11[%c0_17, %c0_18, %c0_19] : memref<1x128x128xbf16, #tpu.memory_space<vmem>>, vector<1x128x128xbf16>
    %20 = vector.shape_cast %19 : vector<1x128x128xbf16> to vector<128x128xbf16>
    %21 = vector.shape_cast %18 : vector<128x128xbf16> to vector<1x128x128xbf16>
    tpu.vector_store %arg11[%c0_17, %c0_18, %c0_19], %21 {strides = array<i32>} : memref<1x128x128xbf16, #tpu.memory_space<vmem>>, vector<1x128x128xbf16>,
    %c0_20 = arith.constant 0 : index
    %c0_21 = arith.constant 0 : index
    %22 = vector.load %arg8[%c0_20, %c0_21] : memref<128x128xbf16, #tpu.memory_space<vmem>>, vector<128x128xbf16>
    %cst_22 = arith.constant dense<0.000000e+00> : vector<128x128xf32>
    %23 = tpu.matmul %3, %22, %cst_22 {dimension_numbers = #tpu.dot_dimension_numbers<[1], [0], [0], [1], [0, 0, 1, 1], [], []>} : vector<128x128xbf16>, vector<128x128xbf16>, vector<128x128xf32> -> vector<128x128xf32>
    %c0_23 = arith.constant 0 : index
    %c0_24 = arith.constant 0 : index
    %24 = vector.load %arg9[%c0_23, %c0_24] : memref<1x128xf32, #tpu.memory_space<vmem>>, vector<1x128xf32>
    %25 = vector.broadcast %24 : vector<1x128xf32> to vector<128x128xf32>
    %26 = arith.addf %23, %25 : vector<128x128xf32>
    %27 = arith.truncf %26 : vector<128x128xf32> to vector<128x128xbf16>
    %c0_25 = arith.constant 0 : index
    %c0_26 = arith.constant 0 : index
    %c0_27 = arith.constant 0 : index
    %28 = vector.load %arg12[%c0_25, %c0_26, %c0_27] : memref<1x128x128xbf16, #tpu.memory_space<vmem>>, vector<1x128x128xbf16>
    %29 = vector.shape_cast %28 : vector<1x128x128xbf16> to vector<128x128xbf16>
    %30 = vector.shape_cast %27 : vector<128x128xbf16> to vector<1x128x128xbf16>
    tpu.vector_store %arg12[%c0_25, %c0_26, %c0_27], %30 {strides = array<i32>} : memref<1x128x128xbf16, #tpu.memory_space<vmem>>, vector<1x128x128xbf16>,
    return
  }
  func.func @transform_0(%arg0: i32, %arg1: i32) -> (i32, i32, i32) {
    %c0_i32 = arith.constant 0 : i32
    %c0_i32_0 = arith.constant 0 : i32
    return %arg0, %arg1, %c0_i32 : i32, i32, i32
  }
  func.func @transform_1(%arg0: i32, %arg1: i32) -> (i32, i32, i32) {
    %c0_i32 = arith.constant 0 : i32
    %c0_i32_0 = arith.constant 0 : i32
    return %arg0, %arg1, %c0_i32 : i32, i32, i32
  }
  func.func @transform_2(%arg0: i32, %arg1: i32) -> (i32, i32) {
    %c0_i32 = arith.constant 0 : i32
    %c0_i32_0 = arith.constant 0 : i32
    %c0_i32_1 = arith.constant 0 : i32
    return %c0_i32, %c0_i32_0 : i32, i32
  }
  func.func @transform_3(%arg0: i32, %arg1: i32) -> (i32, i32) {
    %c0_i32 = arith.constant 0 : i32
    %c0_i32_0 = arith.constant 0 : i32
    %c0_i32_1 = arith.constant 0 : i32
    return %c0_i32, %c0_i32_0 : i32, i32
  }
  func.func @transform_4(%arg0: i32, %arg1: i32) -> (i32, i32) {
    %c0_i32 = arith.constant 0 : i32
    %c0_i32_0 = arith.constant 0 : i32
    %c0_i32_1 = arith.constant 0 : i32
    return %c0_i32, %c0_i32_0 : i32, i32
  }
  func.func @transform_5(%arg0: i32, %arg1: i32) -> (i32, i32) {
    %c0_i32 = arith.constant 0 : i32
    %c0_i32_0 = arith.constant 0 : i32
    %c0_i32_1 = arith.constant 0 : i32
    return %c0_i32, %c0_i32_0 : i32, i32
  }
  func.func @transform_6(%arg0: i32, %arg1: i32) -> (i32, i32) {
    %c0_i32 = arith.constant 0 : i32
    %c0_i32_0 = arith.constant 0 : i32
    %c0_i32_1 = arith.constant 0 : i32
    return %c0_i32, %c0_i32_0 : i32, i32
  }
  func.func @transform_7(%arg0: i32, %arg1: i32) -> (i32, i32) {
    %c0_i32 = arith.constant 0 : i32
    %c0_i32_0 = arith.constant 0 : i32
    %c0_i32_1 = arith.constant 0 : i32
    return %c0_i32, %c0_i32_0 : i32, i32
  }
  func.func @transform_8(%arg0: i32, %arg1: i32) -> (i32, i32, i32) {
    %c0_i32 = arith.constant 0 : i32
    %c0_i32_0 = arith.constant 0 : i32
    return %arg0, %arg1, %c0_i32 : i32, i32, i32
  }
  func.func @transform_9(%arg0: i32, %arg1: i32) -> (i32, i32, i32) {
    %c0_i32 = arith.constant 0 : i32
    %c0_i32_0 = arith.constant 0 : i32
    return %arg0, %arg1, %c0_i32 : i32, i32, i32
  }
  func.func @transform_10(%arg0: i32, %arg1: i32) -> (i32, i32, i32) {
    %c0_i32 = arith.constant 0 : i32
    %c0_i32_0 = arith.constant 0 : i32
    return %arg0, %arg1, %c0_i32 : i32, i32, i32
  }
}

</mosaic_0001>

<llo_original>
// kernel: attention_fuse_forward.3
$region0: #{attention_fuse_forward.3}
  #allocation0 [shape = 'u32[]', space=smem, size = 0x4, offset = 0x4, fixed_abs, tag = 'smem constant byte address 0x4 - core index']
  #allocation1 [shape = 'u32[144,128]{1,0:T(1,128)}', space=vmem, size = 0x12000, scoped, tag = 'internal scratch']
  #allocation2 [shape = 'f32[128,1]{1,0:T(8,128)}', space=vmem, size = 0x10000, scoped, tag = 'scratch operand']
  #allocation3 [shape = 'f32[128,1]{1,0:T(8,128)}', space=vmem, size = 0x10000, scoped, tag = 'scratch operand']
  #allocation4 [shape = 'f32[128,128]{1,0:T(8,128)}', space=vmem, size = 0x10000, scoped, tag = 'scratch operand']
  %s0 = inlined_call_operand.vmem [shape: bf16[2,128,128], index: 0, kind: input, shape index: {}]
  %s1 = inlined_call_operand.vmem [shape: bf16[2,128,128], index: 1, kind: input, shape index: {}]
  %s2 = inlined_call_operand.vmem [shape: bf16[2,128,128], index: 2, kind: input, shape index: {}]
  %s3 = inlined_call_operand.vmem [shape: f32[2,128,128], index: 3, kind: output, shape index: {}]
  %s4 = sld [smem:[#allocation0]]
  $region53: #{attention_fuse_forward.3} parent=0
    _
  %s6 = ssub.s32 1, %s4
  %s7 = scalar_select 0, %s6, %s4
  loop: start=0, step=1, limit=4
  $region2: #{attention_fuse_forward.3} parent=0 // loop_pre_header
    _
  $region3: #{attention_fuse_forward.3} parent=0 // loop_header
    %s9 = sphi 0, %s13
    %p10 = scmp.ge.s32.totalorder %s9, 4
    %s16 = sphi 0, %s35
    %s17 = sphi 0, %s31
    %s18 = sphi 0, %s27
    %s19 = sphi 0, %s16
    %s20 = sphi 0, %s17
    %s21 = sphi 0, %s18
    %s22 = sphi 0, %s19
    %s23 = sphi 0, %s20
    %s24 = sphi 0, %s21
    %s40 = sphi 0, %s42
    %s43 = sphi 0, %s40
    %s44 = sphi 0, %s43
    %s60 = sphi 0, %s44
    %s68 = sphi 0, %s70
    %s71 = sphi 0, %s68
    %s72 = sphi 0, %s71
    %s88 = sphi 0, %s72
    %s96 = sphi 0, %s98
    %s99 = sphi 0, %s96
    %s100 = sphi 0, %s99
    %s116 = sphi 0, %s100
    %s124 = sphi 0, %s126
    %s127 = sphi 0, %s124
    %s128 = sphi 0, %s127
    %s144 = sphi 0, %s128
  $region4: #{attention_fuse_forward.3} parent=0 // loop_header_branch
    %12 = sbr.rel (%p10) target = $region8
  $region5: #{attention_fuse_forward.3} parent=0 // loop_body
    %s14 = ssub.s32 %s9, 1
    %s15 = ssub.s32 %s9, 2
    %s25 = sadd.s32 1, %s18
    %p26 = scmp.ge.s32.totalorder %s25, 1
    %s27 = scalar_select %p26, 0, %s25
    %s28 = sadd.s32 1, %s17
    %s29 = scalar_select %p26, %s28, %s17
    %p30 = scmp.ge.s32.totalorder %s29, 1
    %s31 = scalar_select %p30, 0, %s29
    %s32 = sadd.s32 1, %s16
    %s33 = scalar_select %p30, %s32, %s16
    %p34 = scmp.ge.s32.totalorder %s33, 2
    %s35 = scalar_select %p34, 0, %s33
    %s36 = ssub.s32 %s16, %s35
    %s37 = ssub.s32 %s17, %s31
    %s38 = sor.u32 %s36, %s37
    %p39 = scmp.eq.s32.totalorder %s38, 0
    %s41 = sadd.s32 %s40, 1
    %s42 = scalar_select %p39, %s40, %s41
    %p45 = pneg %p39
    %p46 = scmp.eq.s32.totalorder %s9, 1
    %p47 = por %p45, %p46
    %p48 = scmp.ne.s32.totalorder %s40, %s43
    %p49 = scmp.eq.s32.totalorder %s9, 0
    %p50 = por %p48, %p49
    %p51 = scmp.ne.s32.totalorder %s40, %s43
    %p52 = scmp.eq.s32.totalorder %s14, 1
    %p53 = por %p51, %p52
    %p54 = scmp.ne.s32.totalorder %s43, %s44
    %p55 = scmp.eq.s32.totalorder %s14, 0
    %p56 = por %p54, %p55
    %p57 = scmp.ne.s32.totalorder %s43, %s44
    %p58 = scmp.eq.s32.totalorder %s15, 1
    %p59 = por %p57, %p58
    %p61 = scmp.ne.s32.totalorder %s44, %s60
    %p62 = scmp.eq.s32.totalorder %s15, 0
    %p63 = por %p61, %p62
    %s64 = ssub.s32 %s16, %s35
    %s65 = ssub.s32 %s18, %s27
    %s66 = sor.u32 %s64, %s65
    %p67 = scmp.eq.s32.totalorder %s66, 0
    %s69 = sadd.s32 %s68, 1
    %s70 = scalar_select %p67, %s68, %s69
    %p73 = pneg %p67
    %p74 = scmp.eq.s32.totalorder %s9, 1
    %p75 = por %p73, %p74
    %p76 = scmp.ne.s32.totalorder %s68, %s71
    %p77 = scmp.eq.s32.totalorder %s9, 0
    %p78 = por %p76, %p77
    %p79 = scmp.ne.s32.totalorder %s68, %s71
    %p80 = scmp.eq.s32.totalorder %s14, 1
    %p81 = por %p79, %p80
    %p82 = scmp.ne.s32.totalorder %s71, %s72
    %p83 = scmp.eq.s32.totalorder %s14, 0
    %p84 = por %p82, %p83
    %p85 = scmp.ne.s32.totalorder %s71, %s72
    %p86 = scmp.eq.s32.totalorder %s15, 1
    %p87 = por %p85, %p86
    %p89 = scmp.ne.s32.totalorder %s72, %s88
    %p90 = scmp.eq.s32.totalorder %s15, 0
    %p91 = por %p89, %p90
    %s92 = ssub.s32 %s16, %s35
    %s93 = ssub.s32 %s18, %s27
    %s94 = sor.u32 %s92, %s93
    %p95 = scmp.eq.s32.totalorder %s94, 0
    %s97 = sadd.s32 %s96, 1
    %s98 = scalar_select %p95, %s96, %s97
    %p101 = pneg %p95
    %p102 = scmp.eq.s32.totalorder %s9, 1
    %p103 = por %p101, %p102
    %p104 = scmp.ne.s32.totalorder %s96, %s99
    %p105 = scmp.eq.s32.totalorder %s9, 0
    %p106 = por %p104, %p105
    %p107 = scmp.ne.s32.totalorder %s96, %s99
    %p108 = scmp.eq.s32.totalorder %s14, 1
    %p109 = por %p107, %p108
    %p110 = scmp.ne.s32.totalorder %s99, %s100
    %p111 = scmp.eq.s32.totalorder %s14, 0
    %p112 = por %p110, %p111
    %p113 = scmp.ne.s32.totalorder %s99, %s100
    %p114 = scmp.eq.s32.totalorder %s15, 1
    %p115 = por %p113, %p114
    %p117 = scmp.ne.s32.totalorder %s100, %s116
    %p118 = scmp.eq.s32.totalorder %s15, 0
    %p119 = por %p117, %p118
    %s120 = ssub.s32 %s16, %s35
    %s121 = ssub.s32 %s17, %s31
    %s122 = sor.u32 %s120, %s121
    %p123 = scmp.eq.s32.totalorder %s122, 0
    %s125 = sadd.s32 %s124, 1
    %s126 = scalar_select %p123, %s124, %s125
    %p129 = pneg %p123
    %p130 = scmp.eq.s32.totalorder %s9, 1
    %p131 = por %p129, %p130
    %p132 = scmp.ne.s32.totalorder %s124, %s127
    %p133 = scmp.eq.s32.totalorder %s9, 0
    %p134 = por %p132, %p133
    %p135 = scmp.ne.s32.totalorder %s124, %s127
    %p136 = scmp.eq.s32.totalorder %s14, 1
    %p137 = por %p135, %p136
    %p138 = scmp.ne.s32.totalorder %s127, %s128
    %p139 = scmp.eq.s32.totalorder %s14, 0
    %p140 = por %p138, %p139
    %p141 = scmp.ne.s32.totalorder %s127, %s128
    %p142 = scmp.eq.s32.totalorder %s15, 1
    %p143 = por %p141, %p142
    %p145 = scmp.ne.s32.totalorder %s128, %s144
    %p146 = scmp.eq.s32.totalorder %s15, 0
    %p147 = por %p145, %p146
    %p148 = scmp.le.s32.totalorder 1, %s9
    %p149 = scmp.lt.s32.totalorder %s9, 3
    %p150 = pnand %p148, %p149
    %p151 = pneg %p150
    // Predicated region
    $region9: #{attention_fuse_forward.3} parent=5 // pred_check
      _
    $region10: #{attention_fuse_forward.3} parent=5 // pred_check_branch
      %153 = sbr.rel (%p150) target = $region12
    $region11: #{attention_fuse_forward.3} parent=5 // pred_region
      %s154 = ssub.s32 %s9, 1
    $region12: #{attention_fuse_forward.3} parent=5 // pred_fallthru
      _
    %p155 = scmp.lt.s32.totalorder %s9, 2
    // Predicated region
    $region13: #{attention_fuse_forward.3} parent=5 // pred_check
      %p156 = pneg %p155
    $region14: #{attention_fuse_forward.3} parent=5 // pred_check_branch
      %158 = sbr.rel (%p156) target = $region16
    $region15: #{attention_fuse_forward.3} parent=5 // pred_region
      // Predicated region
      $region17: #{attention_fuse_forward.3} parent=15 // pred_check
        %p159 = pneg %p50
      $region18: #{attention_fuse_forward.3} parent=15 // pred_check_branch
        %161 = sbr.rel (%p159) target = $region20
      $region19: #{attention_fuse_forward.3} parent=15 // pred_region
        %s162 = smul.u32 16, %s17
        %p163 = scmp.lt.s32.totalorder %s16, 1
        %s164 = scalar_select %p163, %s16, 1
        %p165 = scmp.lt.s32.totalorder %s162, 15
        %s166 = scalar_select %p165, %s162, 15
        %s167 = smul.addr %s164, 16
        %s168 = sadd.s32 %s166, %s167
        %s169 = smul.addr %s168, 4
        %s170 = scalar_lea.vmem %s0, %s169
        %s171 = smul.u32 16, %s17
      $region20: #{attention_fuse_forward.3} parent=15 // pred_fallthru
        _
      // Predicated region
      $region21: #{attention_fuse_forward.3} parent=15 // pred_check
        %p172 = pneg %p78
      $region22: #{attention_fuse_forward.3} parent=15 // pred_check_branch
        %174 = sbr.rel (%p172) target = $region24
      $region23: #{attention_fuse_forward.3} parent=15 // pred_region
        %s175 = smul.u32 16, %s18
        %p176 = scmp.lt.s32.totalorder %s16, 1
        %s177 = scalar_select %p176, %s16, 1
        %p178 = scmp.lt.s32.totalorder %s175, 15
        %s179 = scalar_select %p178, %s175, 15
        %s180 = smul.addr %s177, 16
        %s181 = sadd.s32 %s179, %s180
        %s182 = smul.addr %s181, 4
        %s183 = scalar_lea.vmem %s1, %s182
        %s184 = smul.u32 16, %s18
      $region24: #{attention_fuse_forward.3} parent=15 // pred_fallthru
        _
      // Predicated region
      $region25: #{attention_fuse_forward.3} parent=15 // pred_check
        %p185 = pneg %p106
      $region26: #{attention_fuse_forward.3} parent=15 // pred_check_branch
        %187 = sbr.rel (%p185) target = $region28
      $region27: #{attention_fuse_forward.3} parent=15 // pred_region
        %s188 = smul.u32 16, %s18
        %p189 = scmp.lt.s32.totalorder %s16, 1
        %s190 = scalar_select %p189, %s16, 1
        %p191 = scmp.lt.s32.totalorder %s188, 15
        %s192 = scalar_select %p191, %s188, 15
        %s193 = smul.addr %s190, 16
        %s194 = sadd.s32 %s192, %s193
        %s195 = smul.addr %s194, 4
        %s196 = scalar_lea.vmem %s2, %s195
        %s197 = smul.u32 16, %s18
      $region28: #{attention_fuse_forward.3} parent=15 // pred_fallthru
        _
    $region16: #{attention_fuse_forward.3} parent=5 // pred_fallthru
      _
    %p198 = scmp.le.s32.totalorder 1, %s9
    %p199 = scmp.lt.s32.totalorder %s9, 3
    %p200 = pnand %p198, %p199
    %p201 = pneg %p200
    // Predicated region
    $region29: #{attention_fuse_forward.3} parent=5 // pred_check
      _
    $region30: #{attention_fuse_forward.3} parent=5 // pred_check_branch
      %203 = sbr.rel (%p200) target = $region32
    $region31: #{attention_fuse_forward.3} parent=5 // pred_region
      %s204 = ssub.s32 %s9, 1
      %s205 = smul.u32 16, %s20
      %p206 = scmp.lt.s32.totalorder %s19, 1
      %s207 = scalar_select %p206, %s19, 1
      %p208 = scmp.lt.s32.totalorder %s205, 15
      %s209 = scalar_select %p208, %s205, 15
      %s210 = smul.addr %s207, 16
      %s211 = sadd.s32 %s209, %s210
      %s212 = smul.addr %s211, 4
      %s213 = scalar_lea.vmem %s0, %s212
      %p214 = pneg %p56
      %p215 = pneg %p53
      %s216 = smul.u32 16, %s21
      %p217 = scmp.lt.s32.totalorder %s19, 1
      %s218 = scalar_select %p217, %s19, 1
      %p219 = scmp.lt.s32.totalorder %s216, 15
      %s220 = scalar_select %p219, %s216, 15
      %s221 = smul.addr %s218, 16
      %s222 = sadd.s32 %s220, %s221
      %s223 = smul.addr %s222, 4
      %s224 = scalar_lea.vmem %s1, %s223
      %p225 = pneg %p84
      %p226 = pneg %p81
      %s227 = smul.u32 16, %s21
      %p228 = scmp.lt.s32.totalorder %s19, 1
      %s229 = scalar_select %p228, %s19, 1
      %p230 = scmp.lt.s32.totalorder %s227, 15
      %s231 = scalar_select %p230, %s227, 15
      %s232 = smul.addr %s229, 16
      %s233 = sadd.s32 %s231, %s232
      %s234 = smul.addr %s233, 4
      %s235 = scalar_lea.vmem %s2, %s234
      %p236 = pneg %p112
      %p237 = pneg %p109
      %p238 = pneg %p140
      %p239 = pneg %p137
      %s240 = smul.u32 16, %s20
      %p241 = scmp.lt.s32.totalorder %s19, 1
      %s242 = scalar_select %p241, %s19, 1
      %p243 = scmp.lt.s32.totalorder %s240, 15
      %s244 = scalar_select %p243, %s240, 15
      %s245 = smul.addr %s242, 16
      %s246 = sadd.s32 %s244, %s245
      %s247 = smul.addr %s246, 8
      %s248 = scalar_lea.vmem %s3, %s247
      %s249 = smul.u32 16, %s20
      %p250 = scmp.lt.s32.totalorder %s19, 1
      %s251 = scalar_select %p250, %s19, 1
      %p252 = scmp.lt.s32.totalorder %s249, 15
      %s253 = scalar_select %p252, %s249, 15
      %s254 = smul.addr %s251, 16
      %s255 = sadd.s32 %s253, %s254
      %s256 = smul.addr %s255, 4
      %s257 = scalar_lea.vmem %s0, %s256
      %s258 = smul.u32 16, %s20
      %s259 = smul.u32 16, %s21
      %p260 = scmp.lt.s32.totalorder %s19, 1
      %s261 = scalar_select %p260, %s19, 1
      %p262 = scmp.lt.s32.totalorder %s259, 15
      %s263 = scalar_select %p262, %s259, 15
      %s264 = smul.addr %s261, 16
      %s265 = sadd.s32 %s263, %s264
      %s266 = smul.addr %s265, 4
      %s267 = scalar_lea.vmem %s1, %s266
      %s268 = smul.u32 16, %s21
      %s269 = smul.u32 16, %s21
      %p270 = scmp.lt.s32.totalorder %s19, 1
      %s271 = scalar_select %p270, %s19, 1
      %p272 = scmp.lt.s32.totalorder %s269, 15
      %s273 = scalar_select %p272, %s269, 15
      %s274 = smul.addr %s271, 16
      %s275 = sadd.s32 %s273, %s274
      %s276 = smul.addr %s275, 4
      %s277 = scalar_lea.vmem %s2, %s276
      %s278 = smul.u32 16, %s21
      %s279 = smul.u32 16, %s20
      %p280 = scmp.lt.s32.totalorder %s19, 1
      %s281 = scalar_select %p280, %s19, 1
      %p282 = scmp.lt.s32.totalorder %s279, 15
      %s283 = scalar_select %p282, %s279, 15
      %s284 = smul.addr %s281, 16
      %s285 = sadd.s32 %s283, %s284
      %s286 = smul.addr %s285, 8
      %s287 = scalar_lea.vmem %s3, %s286
      %s288 = smul.u32 16, %s20
      %p290 = scmp.eq.s32.totalorder %s21, 0
      // Predicated region
      $region33: #{attention_fuse_forward.3} parent=31 // pred_check
        %p291 = pneg %p290
      $region34: #{attention_fuse_forward.3} parent=31 // pred_check_branch
        %293 = sbr.rel (%p291) target = $region36
      $region35: #{attention_fuse_forward.3} parent=31 // pred_region
        %vm294 = vcmask 7168
        %295 = vst.msk [vmem:[#allocation2] sm:$0xff] %vm294, -inf
        %296 = vst.msk [vmem:[#allocation2 + $0x8] sm:$0xff] %vm294, -inf
        %297 = vst.msk [vmem:[#allocation2 + $0x10] sm:$0xff] %vm294, -inf
        %298 = vst.msk [vmem:[#allocation2 + $0x18] sm:$0xff] %vm294, -inf
        %299 = vst.msk [vmem:[#allocation2 + $0x20] sm:$0xff] %vm294, -inf
        %300 = vst.msk [vmem:[#allocation2 + $0x28] sm:$0xff] %vm294, -inf
        %301 = vst.msk [vmem:[#allocation2 + $0x30] sm:$0xff] %vm294, -inf
        %302 = vst.msk [vmem:[#allocation2 + $0x38] sm:$0xff] %vm294, -inf
        %303 = vst.msk [vmem:[#allocation2 + $0x40] sm:$0xff] %vm294, -inf
        %304 = vst.msk [vmem:[#allocation2 + $0x48] sm:$0xff] %vm294, -inf
        %305 = vst.msk [vmem:[#allocation2 + $0x50] sm:$0xff] %vm294, -inf
        %306 = vst.msk [vmem:[#allocation2 + $0x58] sm:$0xff] %vm294, -inf
        %307 = vst.msk [vmem:[#allocation2 + $0x60] sm:$0xff] %vm294, -inf
        %308 = vst.msk [vmem:[#allocation2 + $0x68] sm:$0xff] %vm294, -inf
        %309 = vst.msk [vmem:[#allocation2 + $0x70] sm:$0xff] %vm294, -inf
        %310 = vst.msk [vmem:[#allocation2 + $0x78] sm:$0xff] %vm294, -inf
        %311 = vst.msk [vmem:[#allocation3] sm:$0xff] %vm294, 0.0
        %312 = vst.msk [vmem:[#allocation3 + $0x8] sm:$0xff] %vm294, 0.0
        %313 = vst.msk [vmem:[#allocation3 + $0x10] sm:$0xff] %vm294, 0.0
        %314 = vst.msk [vmem:[#allocation3 + $0x18] sm:$0xff] %vm294, 0.0
        %315 = vst.msk [vmem:[#allocation3 + $0x20] sm:$0xff] %vm294, 0.0
        %316 = vst.msk [vmem:[#allocation3 + $0x28] sm:$0xff] %vm294, 0.0
        %317 = vst.msk [vmem:[#allocation3 + $0x30] sm:$0xff] %vm294, 0.0
        %318 = vst.msk [vmem:[#allocation3 + $0x38] sm:$0xff] %vm294, 0.0
        %319 = vst.msk [vmem:[#allocation3 + $0x40] sm:$0xff] %vm294, 0.0
        %320 = vst.msk [vmem:[#allocation3 + $0x48] sm:$0xff] %vm294, 0.0
        %321 = vst.msk [vmem:[#allocation3 + $0x50] sm:$0xff] %vm294, 0.0
        %322 = vst.msk [vmem:[#allocation3 + $0x58] sm:$0xff] %vm294, 0.0
        %323 = vst.msk [vmem:[#allocation3 + $0x60] sm:$0xff] %vm294, 0.0
        %324 = vst.msk [vmem:[#allocation3 + $0x68] sm:$0xff] %vm294, 0.0
        %325 = vst.msk [vmem:[#allocation3 + $0x70] sm:$0xff] %vm294, 0.0
        %326 = vst.msk [vmem:[#allocation3 + $0x78] sm:$0xff] %vm294, 0.0
        %327 = vst [vmem:[#allocation4] sm:$0xff] 0.0
        %328 = vst [vmem:[#allocation4 + $0x8] sm:$0xff] 0.0
        %329 = vst [vmem:[#allocation4 + $0x10] sm:$0xff] 0.0
        %330 = vst [vmem:[#allocation4 + $0x18] sm:$0xff] 0.0
        %331 = vst [vmem:[#allocation4 + $0x20] sm:$0xff] 0.0
        %332 = vst [vmem:[#allocation4 + $0x28] sm:$0xff] 0.0
        %333 = vst [vmem:[#allocation4 + $0x30] sm:$0xff] 0.0
        %334 = vst [vmem:[#allocation4 + $0x38] sm:$0xff] 0.0
        %335 = vst [vmem:[#allocation4 + $0x40] sm:$0xff] 0.0
        %336 = vst [vmem:[#allocation4 + $0x48] sm:$0xff] 0.0
        %337 = vst [vmem:[#allocation4 + $0x50] sm:$0xff] 0.0
        %338 = vst [vmem:[#allocation4 + $0x58] sm:$0xff] 0.0
        %339 = vst [vmem:[#allocation4 + $0x60] sm:$0xff] 0.0
        %340 = vst [vmem:[#allocation4 + $0x68] sm:$0xff] 0.0
        %341 = vst [vmem:[#allocation4 + $0x70] sm:$0xff] 0.0
        %342 = vst [vmem:[#allocation4 + $0x78] sm:$0xff] 0.0
      $region36: #{attention_fuse_forward.3} parent=31 // pred_fallthru
        _
      %v343 = vld [vmem:[%s257] sm:$0xf]
      %v344 = vld [vmem:[%s257 + $0x4] sm:$0xf]
      %v345 = vld [vmem:[%s257 + $0x8] sm:$0xf]
      %v346 = vld [vmem:[%s257 + $0xc] sm:$0xf]
      %v347 = vld [vmem:[%s257 + $0x10] sm:$0xf]
      %v348 = vld [vmem:[%s257 + $0x14] sm:$0xf]
      %v349 = vld [vmem:[%s257 + $0x18] sm:$0xf]
      %v350 = vld [vmem:[%s257 + $0x1c] sm:$0xf]
      %v351 = vld [vmem:[%s257 + $0x20] sm:$0xf]
      %v352 = vld [vmem:[%s257 + $0x24] sm:$0xf]
      %v353 = vld [vmem:[%s257 + $0x28] sm:$0xf]
      %v354 = vld [vmem:[%s257 + $0x2c] sm:$0xf]
      %v355 = vld [vmem:[%s257 + $0x30] sm:$0xf]
      %v356 = vld [vmem:[%s257 + $0x34] sm:$0xf]
      %v357 = vld [vmem:[%s257 + $0x38] sm:$0xf]
      %v358 = vld [vmem:[%s257 + $0x3c] sm:$0xf]
      %v359 = vld [vmem:[%s267] sm:$0xf]
      %v360 = vld [vmem:[%s267 + $0x4] sm:$0xf]
      %v361 = vld [vmem:[%s267 + $0x8] sm:$0xf]
      %v362 = vld [vmem:[%s267 + $0xc] sm:$0xf]
      %v363 = vld [vmem:[%s267 + $0x10] sm:$0xf]
      %v364 = vld [vmem:[%s267 + $0x14] sm:$0xf]
      %v365 = vld [vmem:[%s267 + $0x18] sm:$0xf]
      %v366 = vld [vmem:[%s267 + $0x1c] sm:$0xf]
      %v367 = vld [vmem:[%s267 + $0x20] sm:$0xf]
      %v368 = vld [vmem:[%s267 + $0x24] sm:$0xf]
      %v369 = vld [vmem:[%s267 + $0x28] sm:$0xf]
      %v370 = vld [vmem:[%s267 + $0x2c] sm:$0xf]
      %v371 = vld [vmem:[%s267 + $0x30] sm:$0xf]
      %v372 = vld [vmem:[%s267 + $0x34] sm:$0xf]
      %v373 = vld [vmem:[%s267 + $0x38] sm:$0xf]
      %v374 = vld [vmem:[%s267 + $0x3c] sm:$0xf]
      %v391 = vunpack.c.l.b16 %v343
      %v392 = vunpack.c.l.b16 %v344
      %v393 = vunpack.c.l.b16 %v345
      %v394 = vunpack.c.l.b16 %v346
      %v395 = vunpack.c.l.b16 %v347
      %v396 = vunpack.c.l.b16 %v348
      %v397 = vunpack.c.l.b16 %v349
      %v398 = vunpack.c.l.b16 %v350
      %v399 = vunpack.c.l.b16 %v351
      %v400 = vunpack.c.l.b16 %v352
      %v401 = vunpack.c.l.b16 %v353
      %v402 = vunpack.c.l.b16 %v354
      %v403 = vunpack.c.l.b16 %v355
      %v404 = vunpack.c.l.b16 %v356
      %v405 = vunpack.c.l.b16 %v357
      %v406 = vunpack.c.l.b16 %v358
      %v407 = vpack.c.b16 %v392, %v391
      %v408 = vpack.c.b16 %v394, %v393
      %v409 = vpack.c.b16 %v396, %v395
      %v410 = vpack.c.b16 %v398, %v397
      %v411 = vpack.c.b16 %v400, %v399
      %v412 = vpack.c.b16 %v402, %v401
      %v413 = vpack.c.b16 %v404, %v403
      %v414 = vpack.c.b16 %v406, %v405
      %v439 = vunpack.c.l.b16 %v359
      %v440 = vunpack.c.l.b16 %v360
      %v441 = vunpack.c.l.b16 %v361
      %v442 = vunpack.c.l.b16 %v362
      %v443 = vunpack.c.l.b16 %v363
      %v444 = vunpack.c.l.b16 %v364
      %v445 = vunpack.c.l.b16 %v365
      %v446 = vunpack.c.l.b16 %v366
      %v447 = vunpack.c.l.b16 %v367
      %v448 = vunpack.c.l.b16 %v368
      %v449 = vunpack.c.l.b16 %v369
      %v450 = vunpack.c.l.b16 %v370
      %v451 = vunpack.c.l.b16 %v371
      %v452 = vunpack.c.l.b16 %v372
      %v453 = vunpack.c.l.b16 %v373
      %v454 = vunpack.c.l.b16 %v374
      %v455 = vpack.c.b16 %v440, %v439
      %v456 = vpack.c.b16 %v442, %v441
      %v457 = vpack.c.b16 %v444, %v443
      %v458 = vpack.c.b16 %v446, %v445
      %v459 = vpack.c.b16 %v448, %v447
      %v460 = vpack.c.b16 %v450, %v449
      %v461 = vpack.c.b16 %v452, %v451
      %v462 = vpack.c.b16 %v454, %v453
      %471 = vmatprep.subr.bf16.mxu0 0
      %472 = vmatpush1.bf16.xpose.msra.mxu0 %v455
      %473 = vmatprep.subr.bf16.mxu0 0
      %474 = vmatpush1.bf16.xpose.msra.mxu0 %v456
      %475 = vmatprep.subr.bf16.mxu0 0
      %476 = vmatpush1.bf16.xpose.msra.mxu0 %v457
      %477 = vmatprep.subr.bf16.mxu0 0
      %478 = vmatpush1.bf16.xpose.msra.mxu0 %v458
      %479 = vmatprep.subr.bf16.mxu0 0
      %480 = vmatpush1.bf16.xpose.msra.mxu0 %v459
      %481 = vmatprep.subr.bf16.mxu0 0
      %482 = vmatpush1.bf16.xpose.msra.mxu0 %v460
      %483 = vmatprep.subr.bf16.mxu0 0
      %484 = vmatpush1.bf16.xpose.msra.mxu0 %v461
      %485 = vmatprep.subr.bf16.mxu0 0
      %486 = vmatpush1.bf16.xpose.msra.mxu0 %v462
      %487 = vmatprep.subr.bf16.mxu0 0
      %488 = vmatpush1.bf16.xpose.msra.mxu0 0
      %489 = vmatprep.subr.bf16.mxu0 0
      %490 = vmatpush1.bf16.xpose.msra.mxu0 0
      %491 = vmatprep.subr.bf16.mxu0 0
      %492 = vmatpush1.bf16.xpose.msra.mxu0 0
      %493 = vmatprep.subr.bf16.mxu0 0
      %494 = vmatpush1.bf16.xpose.msra.mxu0 0
      %495 = vmatprep.subr.bf16.mxu0 0
      %496 = vmatpush1.bf16.xpose.msra.mxu0 0
      %497 = vmatprep.subr.bf16.mxu0 0
      %498 = vmatpush1.bf16.xpose.msra.mxu0 0
      %499 = vmatprep.subr.bf16.mxu0 0
      %500 = vmatpush1.bf16.xpose.msra.mxu0 0
      %501 = vmatprep.subr.bf16.mxu0 0
      %502 = vmatpush1.bf16.xpose.msra.mxu0 0
      %503 = vmatprep.mubr.bf16.mxu0 0
      %504 = vmatmul.mubr.bf16.gmra.mrb[0].mxu0 %v407
      %v505 = vpop.f32.mrb[0].mxu0
      %v506 = vadd.f32 0.0, %v505
      %v507 = vpop.f32.mrb[0].mxu0
      %v508 = vpop.f32.mrb[0].mxu0
      %v509 = vadd.f32 0.0, %v508
      %v510 = vpop.f32.mrb[0].mxu0
      %511 = vmatprep.mubr.bf16.mxu0 0
      %512 = vmatmul.mubr.bf16.gmra.mrb[0].mxu0 %v408
      %v513 = vpop.f32.mrb[0].mxu0
      %v514 = vadd.f32 0.0, %v513
      %v515 = vpop.f32.mrb[0].mxu0
      %v516 = vpop.f32.mrb[0].mxu0
      %v517 = vadd.f32 0.0, %v516
      %v518 = vpop.f32.mrb[0].mxu0
      %519 = vmatprep.mubr.bf16.mxu0 0
      %520 = vmatmul.mubr.bf16.gmra.mrb[0].mxu0 %v409
      %v521 = vpop.f32.mrb[0].mxu0
      %v522 = vadd.f32 0.0, %v521
      %v523 = vpop.f32.mrb[0].mxu0
      %v524 = vpop.f32.mrb[0].mxu0
      %v525 = vadd.f32 0.0, %v524
      %v526 = vpop.f32.mrb[0].mxu0
      %527 = vmatprep.mubr.bf16.mxu0 0
      %528 = vmatmul.mubr.bf16.gmra.mrb[0].mxu0 %v410
      %v529 = vpop.f32.mrb[0].mxu0
      %v530 = vadd.f32 0.0, %v529
      %v531 = vpop.f32.mrb[0].mxu0
      %v532 = vpop.f32.mrb[0].mxu0
      %v533 = vadd.f32 0.0, %v532
      %v534 = vpop.f32.mrb[0].mxu0
      %535 = vmatprep.mubr.bf16.mxu0 0
      %536 = vmatmul.mubr.bf16.gmra.mrb[0].mxu0 %v411
      %v537 = vpop.f32.mrb[0].mxu0
      %v538 = vadd.f32 0.0, %v537
      %v539 = vpop.f32.mrb[0].mxu0
      %v540 = vpop.f32.mrb[0].mxu0
      %v541 = vadd.f32 0.0, %v540
      %v542 = vpop.f32.mrb[0].mxu0
      %543 = vmatprep.mubr.bf16.mxu0 0
      %544 = vmatmul.mubr.bf16.gmra.mrb[0].mxu0 %v412
      %v545 = vpop.f32.mrb[0].mxu0
      %v546 = vadd.f32 0.0, %v545
      %v547 = vpop.f32.mrb[0].mxu0
      %v548 = vpop.f32.mrb[0].mxu0
      %v549 = vadd.f32 0.0, %v548
      %v550 = vpop.f32.mrb[0].mxu0
      %551 = vmatprep.mubr.bf16.mxu0 0
      %552 = vmatmul.mubr.bf16.gmra.mrb[0].mxu0 %v413
      %v553 = vpop.f32.mrb[0].mxu0
      %v554 = vadd.f32 0.0, %v553
      %v555 = vpop.f32.mrb[0].mxu0
      %v556 = vpop.f32.mrb[0].mxu0
      %v557 = vadd.f32 0.0, %v556
      %v558 = vpop.f32.mrb[0].mxu0
      %559 = vmatprep.mubr.bf16.mxu0 0
      %560 = vmatmul.mubr.bf16.gmra.mrb[0].mxu0 %v414
      %v561 = vpop.f32.mrb[0].mxu0
      %v562 = vadd.f32 0.0, %v561
      %v563 = vpop.f32.mrb[0].mxu0
      %v564 = vpop.f32.mrb[0].mxu0
      %v565 = vadd.f32 0.0, %v564
      %v566 = vpop.f32.mrb[0].mxu0
      %567 = vdwg.mxu0
      %v568 = vmul.f32 %v506, 0.088388346
      %v569 = vmul.f32 %v509, 0.088388346
      %v570 = vmul.f32 %v514, 0.088388346
      %v571 = vmul.f32 %v517, 0.088388346
      %v572 = vmul.f32 %v522, 0.088388346
      %v573 = vmul.f32 %v525, 0.088388346
      %v574 = vmul.f32 %v530, 0.088388346
      %v575 = vmul.f32 %v533, 0.088388346
      %v576 = vmul.f32 %v538, 0.088388346
      %v577 = vmul.f32 %v541, 0.088388346
      %v578 = vmul.f32 %v546, 0.088388346
      %v579 = vmul.f32 %v549, 0.088388346
      %v580 = vmul.f32 %v554, 0.088388346
      %v581 = vmul.f32 %v557, 0.088388346
      %v582 = vmul.f32 %v562, 0.088388346
      %v583 = vmul.f32 %v565, 0.088388346
      %v584 = vld [vmem:[#allocation2] sm:$0xff]
      %v585 = vld [vmem:[#allocation2 + $0x8] sm:$0xff]
      %v586 = vld [vmem:[#allocation2 + $0x10] sm:$0xff]
      %v587 = vld [vmem:[#allocation2 + $0x18] sm:$0xff]
      %v588 = vld [vmem:[#allocation2 + $0x20] sm:$0xff]
      %v589 = vld [vmem:[#allocation2 + $0x28] sm:$0xff]
      %v590 = vld [vmem:[#allocation2 + $0x30] sm:$0xff]
      %v591 = vld [vmem:[#allocation2 + $0x38] sm:$0xff]
      %v592 = vld [vmem:[#allocation2 + $0x40] sm:$0xff]
      %v593 = vld [vmem:[#allocation2 + $0x48] sm:$0xff]
      %v594 = vld [vmem:[#allocation2 + $0x50] sm:$0xff]
      %v595 = vld [vmem:[#allocation2 + $0x58] sm:$0xff]
      %v596 = vld [vmem:[#allocation2 + $0x60] sm:$0xff]
      %v597 = vld [vmem:[#allocation2 + $0x68] sm:$0xff]
      %v598 = vld [vmem:[#allocation2 + $0x70] sm:$0xff]
      %v599 = vld [vmem:[#allocation2 + $0x78] sm:$0xff]
      %600 = vmax.xlane.f32.xlu0 %v568
      %v601 = vpop.xlane.xlu0 %600
      %602 = vmax.xlane.f32.xlu0 %v569
      %v603 = vpop.xlane.xlu0 %602
      %604 = vmax.xlane.f32.xlu0 %v570
      %v605 = vpop.xlane.xlu0 %604
      %606 = vmax.xlane.f32.xlu0 %v571
      %v607 = vpop.xlane.xlu0 %606
      %608 = vmax.xlane.f32.xlu0 %v572
      %v609 = vpop.xlane.xlu0 %608
      %610 = vmax.xlane.f32.xlu0 %v573
      %v611 = vpop.xlane.xlu0 %610
      %612 = vmax.xlane.f32.xlu0 %v574
      %v613 = vpop.xlane.xlu0 %612
      %614 = vmax.xlane.f32.xlu0 %v575
      %v615 = vpop.xlane.xlu0 %614
      %616 = vmax.xlane.f32.xlu0 %v576
      %v617 = vpop.xlane.xlu0 %616
      %618 = vmax.xlane.f32.xlu0 %v577
      %v619 = vpop.xlane.xlu0 %618
      %620 = vmax.xlane.f32.xlu0 %v578
      %v621 = vpop.xlane.xlu0 %620
      %622 = vmax.xlane.f32.xlu0 %v579
      %v623 = vpop.xlane.xlu0 %622
      %624 = vmax.xlane.f32.xlu0 %v580
      %v625 = vpop.xlane.xlu0 %624
      %626 = vmax.xlane.f32.xlu0 %v581
      %v627 = vpop.xlane.xlu0 %626
      %628 = vmax.xlane.f32.xlu0 %v582
      %v629 = vpop.xlane.xlu0 %628
      %630 = vmax.xlane.f32.xlu0 %v583
      %v631 = vpop.xlane.xlu0 %630
      %v632 = vmax.f32 %v584, %v601
      %v633 = vmax.f32 %v585, %v603
      %v634 = vmax.f32 %v586, %v605
      %v635 = vmax.f32 %v587, %v607
      %v636 = vmax.f32 %v588, %v609
      %v637 = vmax.f32 %v589, %v611
      %v638 = vmax.f32 %v590, %v613
      %v639 = vmax.f32 %v591, %v615
      %v640 = vmax.f32 %v592, %v617
      %v641 = vmax.f32 %v593, %v619
      %v642 = vmax.f32 %v594, %v621
      %v643 = vmax.f32 %v595, %v623
      %v644 = vmax.f32 %v596, %v625
      %v645 = vmax.f32 %v597, %v627
      %v646 = vmax.f32 %v598, %v629
      %v647 = vmax.f32 %v599, %v631
      %v648 = vsub.f32 %v584, %v632
      %v649 = vsub.f32 %v585, %v633
      %v650 = vsub.f32 %v586, %v634
      %v651 = vsub.f32 %v587, %v635
      %v652 = vsub.f32 %v588, %v636
      %v653 = vsub.f32 %v589, %v637
      %v654 = vsub.f32 %v590, %v638
      %v655 = vsub.f32 %v591, %v639
      %v656 = vsub.f32 %v592, %v640
      %v657 = vsub.f32 %v593, %v641
      %v658 = vsub.f32 %v594, %v642
      %v659 = vsub.f32 %v595, %v643
      %v660 = vsub.f32 %v596, %v644
      %v661 = vsub.f32 %v597, %v645
      %v662 = vsub.f32 %v598, %v646
      %v663 = vsub.f32 %v599, %v647
      %v664 = vmul.f32 %v648, 1.442695
      %v665 = vpow.pop %v664
      %v666 = vmul.f32 %v649, 1.442695
      %v667 = vpow.pop %v666
      %v668 = vmul.f32 %v650, 1.442695
      %v669 = vpow.pop %v668
      %v670 = vmul.f32 %v651, 1.442695
      %v671 = vpow.pop %v670
      %v672 = vmul.f32 %v652, 1.442695
      %v673 = vpow.pop %v672
      %v674 = vmul.f32 %v653, 1.442695
      %v675 = vpow.pop %v674
      %v676 = vmul.f32 %v654, 1.442695
      %v677 = vpow.pop %v676
      %v678 = vmul.f32 %v655, 1.442695
      %v679 = vpow.pop %v678
      %v680 = vmul.f32 %v656, 1.442695
      %v681 = vpow.pop %v680
      %v682 = vmul.f32 %v657, 1.442695
      %v683 = vpow.pop %v682
      %v684 = vmul.f32 %v658, 1.442695
      %v685 = vpow.pop %v684
      %v686 = vmul.f32 %v659, 1.442695
      %v687 = vpow.pop %v686
      %v688 = vmul.f32 %v660, 1.442695
      %v689 = vpow.pop %v688
      %v690 = vmul.f32 %v661, 1.442695
      %v691 = vpow.pop %v690
      %v692 = vmul.f32 %v662, 1.442695
      %v693 = vpow.pop %v692
      %v694 = vmul.f32 %v663, 1.442695
      %v695 = vpow.pop %v694
      %697 = vset.pattern.permute.xlu0 0
      %698 = vperm.xlu0 %697, %v632
      %v699 = vpop.permute.xlu0 %698
      %702 = vset.pattern.permute.xlu0 0
      %703 = vperm.xlu0 %702, %v633
      %v704 = vpop.permute.xlu0 %703
      %707 = vset.pattern.permute.xlu0 0
      %708 = vperm.xlu0 %707, %v634
      %v709 = vpop.permute.xlu0 %708
      %712 = vset.pattern.permute.xlu0 0
      %713 = vperm.xlu0 %712, %v635
      %v714 = vpop.permute.xlu0 %713
      %717 = vset.pattern.permute.xlu0 0
      %718 = vperm.xlu0 %717, %v636
      %v719 = vpop.permute.xlu0 %718
      %722 = vset.pattern.permute.xlu0 0
      %723 = vperm.xlu0 %722, %v637
      %v724 = vpop.permute.xlu0 %723
      %727 = vset.pattern.permute.xlu0 0
      %728 = vperm.xlu0 %727, %v638
      %v729 = vpop.permute.xlu0 %728
      %732 = vset.pattern.permute.xlu0 0
      %733 = vperm.xlu0 %732, %v639
      %v734 = vpop.permute.xlu0 %733
      %737 = vset.pattern.permute.xlu0 0
      %738 = vperm.xlu0 %737, %v640
      %v739 = vpop.permute.xlu0 %738
      %742 = vset.pattern.permute.xlu0 0
      %743 = vperm.xlu0 %742, %v641
      %v744 = vpop.permute.xlu0 %743
      %747 = vset.pattern.permute.xlu0 0
      %748 = vperm.xlu0 %747, %v642
      %v749 = vpop.permute.xlu0 %748
      %752 = vset.pattern.permute.xlu0 0
      %753 = vperm.xlu0 %752, %v643
      %v754 = vpop.permute.xlu0 %753
      %757 = vset.pattern.permute.xlu0 0
      %758 = vperm.xlu0 %757, %v644
      %v759 = vpop.permute.xlu0 %758
      %762 = vset.pattern.permute.xlu0 0
      %763 = vperm.xlu0 %762, %v645
      %v764 = vpop.permute.xlu0 %763
      %767 = vset.pattern.permute.xlu0 0
      %768 = vperm.xlu0 %767, %v646
      %v769 = vpop.permute.xlu0 %768
      %772 = vset.pattern.permute.xlu0 0
      %773 = vperm.xlu0 %772, %v647
      %v774 = vpop.permute.xlu0 %773
      %v776 = vsub.f32 %v568, %v699
      %v777 = vsub.f32 %v569, %v704
      %v778 = vsub.f32 %v570, %v709
      %v779 = vsub.f32 %v571, %v714
      %v780 = vsub.f32 %v572, %v719
      %v781 = vsub.f32 %v573, %v724
      %v782 = vsub.f32 %v574, %v729
      %v783 = vsub.f32 %v575, %v734
      %v784 = vsub.f32 %v576, %v739
      %v785 = vsub.f32 %v577, %v744
      %v786 = vsub.f32 %v578, %v749
      %v787 = vsub.f32 %v579, %v754
      %v788 = vsub.f32 %v580, %v759
      %v789 = vsub.f32 %v581, %v764
      %v790 = vsub.f32 %v582, %v769
      %v791 = vsub.f32 %v583, %v774
      %v792 = vmul.f32 %v776, 1.442695
      %v793 = vpow.pop %v792
      %v794 = vmul.f32 %v777, 1.442695
      %v795 = vpow.pop %v794
      %v796 = vmul.f32 %v778, 1.442695
      %v797 = vpow.pop %v796
      %v798 = vmul.f32 %v779, 1.442695
      %v799 = vpow.pop %v798
      %v800 = vmul.f32 %v780, 1.442695
      %v801 = vpow.pop %v800
      %v802 = vmul.f32 %v781, 1.442695
      %v803 = vpow.pop %v802
      %v804 = vmul.f32 %v782, 1.442695
      %v805 = vpow.pop %v804
      %v806 = vmul.f32 %v783, 1.442695
      %v807 = vpow.pop %v806
      %v808 = vmul.f32 %v784, 1.442695
      %v809 = vpow.pop %v808
      %v810 = vmul.f32 %v785, 1.442695
      %v811 = vpow.pop %v810
      %v812 = vmul.f32 %v786, 1.442695
      %v813 = vpow.pop %v812
      %v814 = vmul.f32 %v787, 1.442695
      %v815 = vpow.pop %v814
      %v816 = vmul.f32 %v788, 1.442695
      %v817 = vpow.pop %v816
      %v818 = vmul.f32 %v789, 1.442695
      %v819 = vpow.pop %v818
      %v820 = vmul.f32 %v790, 1.442695
      %v821 = vpow.pop %v820
      %v822 = vmul.f32 %v791, 1.442695
      %v823 = vpow.pop %v822
      %v824 = vld [vmem:[#allocation3] sm:$0xff]
      %v825 = vld [vmem:[#allocation3 + $0x8] sm:$0xff]
      %v826 = vld [vmem:[#allocation3 + $0x10] sm:$0xff]
      %v827 = vld [vmem:[#allocation3 + $0x18] sm:$0xff]
      %v828 = vld [vmem:[#allocation3 + $0x20] sm:$0xff]
      %v829 = vld [vmem:[#allocation3 + $0x28] sm:$0xff]
      %v830 = vld [vmem:[#allocation3 + $0x30] sm:$0xff]
      %v831 = vld [vmem:[#allocation3 + $0x38] sm:$0xff]
      %v832 = vld [vmem:[#allocation3 + $0x40] sm:$0xff]
      %v833 = vld [vmem:[#allocation3 + $0x48] sm:$0xff]
      %v834 = vld [vmem:[#allocation3 + $0x50] sm:$0xff]
      %v835 = vld [vmem:[#allocation3 + $0x58] sm:$0xff]
      %v836 = vld [vmem:[#allocation3 + $0x60] sm:$0xff]
      %v837 = vld [vmem:[#allocation3 + $0x68] sm:$0xff]
      %v838 = vld [vmem:[#allocation3 + $0x70] sm:$0xff]
      %v839 = vld [vmem:[#allocation3 + $0x78] sm:$0xff]
      %v840 = vmul.f32 %v665, %v824
      %v841 = vmul.f32 %v667, %v825
      %v842 = vmul.f32 %v669, %v826
      %v843 = vmul.f32 %v671, %v827
      %v844 = vmul.f32 %v673, %v828
      %v845 = vmul.f32 %v675, %v829
      %v846 = vmul.f32 %v677, %v830
      %v847 = vmul.f32 %v679, %v831
      %v848 = vmul.f32 %v681, %v832
      %v849 = vmul.f32 %v683, %v833
      %v850 = vmul.f32 %v685, %v834
      %v851 = vmul.f32 %v687, %v835
      %v852 = vmul.f32 %v689, %v836
      %v853 = vmul.f32 %v691, %v837
      %v854 = vmul.f32 %v693, %v838
      %v855 = vmul.f32 %v695, %v839
      %856 = vadd.xlane.f32.xlu0 %v793
      %v857 = vpop.xlane.xlu0 %856
      %858 = vadd.xlane.f32.xlu0 %v795
      %v859 = vpop.xlane.xlu0 %858
      %860 = vadd.xlane.f32.xlu0 %v797
      %v861 = vpop.xlane.xlu0 %860
      %862 = vadd.xlane.f32.xlu0 %v799
      %v863 = vpop.xlane.xlu0 %862
      %864 = vadd.xlane.f32.xlu0 %v801
      %v865 = vpop.xlane.xlu0 %864
      %866 = vadd.xlane.f32.xlu0 %v803
      %v867 = vpop.xlane.xlu0 %866
      %868 = vadd.xlane.f32.xlu0 %v805
      %v869 = vpop.xlane.xlu0 %868
      %870 = vadd.xlane.f32.xlu0 %v807
      %v871 = vpop.xlane.xlu0 %870
      %872 = vadd.xlane.f32.xlu0 %v809
      %v873 = vpop.xlane.xlu0 %872
      %874 = vadd.xlane.f32.xlu0 %v811
      %v875 = vpop.xlane.xlu0 %874
      %876 = vadd.xlane.f32.xlu0 %v813
      %v877 = vpop.xlane.xlu0 %876
      %878 = vadd.xlane.f32.xlu0 %v815
      %v879 = vpop.xlane.xlu0 %878
      %880 = vadd.xlane.f32.xlu0 %v817
      %v881 = vpop.xlane.xlu0 %880
      %882 = vadd.xlane.f32.xlu0 %v819
      %v883 = vpop.xlane.xlu0 %882
      %884 = vadd.xlane.f32.xlu0 %v821
      %v885 = vpop.xlane.xlu0 %884
      %886 = vadd.xlane.f32.xlu0 %v823
      %v887 = vpop.xlane.xlu0 %886
      %v888 = vadd.f32 %v840, %v857
      %v889 = vadd.f32 %v841, %v859
      %v890 = vadd.f32 %v842, %v861
      %v891 = vadd.f32 %v843, %v863
      %v892 = vadd.f32 %v844, %v865
      %v893 = vadd.f32 %v845, %v867
      %v894 = vadd.f32 %v846, %v869
      %v895 = vadd.f32 %v847, %v871
      %v896 = vadd.f32 %v848, %v873
      %v897 = vadd.f32 %v849, %v875
      %v898 = vadd.f32 %v850, %v877
      %v899 = vadd.f32 %v851, %v879
      %v900 = vadd.f32 %v852, %v881
      %v901 = vadd.f32 %v853, %v883
      %v902 = vadd.f32 %v854, %v885
      %v903 = vadd.f32 %v855, %v887
      %vm904 = vcmask 7168
      %905 = vst.msk [vmem:[#allocation3] sm:$0xff] %vm904, %v888
      %906 = vst.msk [vmem:[#allocation3 + $0x8] sm:$0xff] %vm904, %v889
      %907 = vst.msk [vmem:[#allocation3 + $0x10] sm:$0xff] %vm904, %v890
      %908 = vst.msk [vmem:[#allocation3 + $0x18] sm:$0xff] %vm904, %v891
      %909 = vst.msk [vmem:[#allocation3 + $0x20] sm:$0xff] %vm904, %v892
      %910 = vst.msk [vmem:[#allocation3 + $0x28] sm:$0xff] %vm904, %v893
      %911 = vst.msk [vmem:[#allocation3 + $0x30] sm:$0xff] %vm904, %v894
      %912 = vst.msk [vmem:[#allocation3 + $0x38] sm:$0xff] %vm904, %v895
      %913 = vst.msk [vmem:[#allocation3 + $0x40] sm:$0xff] %vm904, %v896
      %914 = vst.msk [vmem:[#allocation3 + $0x48] sm:$0xff] %vm904, %v897
      %915 = vst.msk [vmem:[#allocation3 + $0x50] sm:$0xff] %vm904, %v898
      %916 = vst.msk [vmem:[#allocation3 + $0x58] sm:$0xff] %vm904, %v899
      %917 = vst.msk [vmem:[#allocation3 + $0x60] sm:$0xff] %vm904, %v900
      %918 = vst.msk [vmem:[#allocation3 + $0x68] sm:$0xff] %vm904, %v901
      %919 = vst.msk [vmem:[#allocation3 + $0x70] sm:$0xff] %vm904, %v902
      %920 = vst.msk [vmem:[#allocation3 + $0x78] sm:$0xff] %vm904, %v903
      %v921 = vld [vmem:[#allocation4] sm:$0xff]
      %v922 = vld [vmem:[#allocation4 + $0x8] sm:$0xff]
      %v923 = vld [vmem:[#allocation4 + $0x10] sm:$0xff]
      %v924 = vld [vmem:[#allocation4 + $0x18] sm:$0xff]
      %v925 = vld [vmem:[#allocation4 + $0x20] sm:$0xff]
      %v926 = vld [vmem:[#allocation4 + $0x28] sm:$0xff]
      %v927 = vld [vmem:[#allocation4 + $0x30] sm:$0xff]
      %v928 = vld [vmem:[#allocation4 + $0x38] sm:$0xff]
      %v929 = vld [vmem:[#allocation4 + $0x40] sm:$0xff]
      %v930 = vld [vmem:[#allocation4 + $0x48] sm:$0xff]
      %v931 = vld [vmem:[#allocation4 + $0x50] sm:$0xff]
      %v932 = vld [vmem:[#allocation4 + $0x58] sm:$0xff]
      %v933 = vld [vmem:[#allocation4 + $0x60] sm:$0xff]
      %v934 = vld [vmem:[#allocation4 + $0x68] sm:$0xff]
      %v935 = vld [vmem:[#allocation4 + $0x70] sm:$0xff]
      %v936 = vld [vmem:[#allocation4 + $0x78] sm:$0xff]
      %938 = vset.pattern.permute.xlu0 0
      %939 = vperm.xlu0 %938, %v665
      %v940 = vpop.permute.xlu0 %939
      %943 = vset.pattern.permute.xlu0 0
      %944 = vperm.xlu0 %943, %v667
      %v945 = vpop.permute.xlu0 %944
      %948 = vset.pattern.permute.xlu0 0
      %949 = vperm.xlu0 %948, %v669
      %v950 = vpop.permute.xlu0 %949
      %953 = vset.pattern.permute.xlu0 0
      %954 = vperm.xlu0 %953, %v671
      %v955 = vpop.permute.xlu0 %954
      %958 = vset.pattern.permute.xlu0 0
      %959 = vperm.xlu0 %958, %v673
      %v960 = vpop.permute.xlu0 %959
      %963 = vset.pattern.permute.xlu0 0
      %964 = vperm.xlu0 %963, %v675
      %v965 = vpop.permute.xlu0 %964
      %968 = vset.pattern.permute.xlu0 0
      %969 = vperm.xlu0 %968, %v677
      %v970 = vpop.permute.xlu0 %969
      %973 = vset.pattern.permute.xlu0 0
      %974 = vperm.xlu0 %973, %v679
      %v975 = vpop.permute.xlu0 %974
      %978 = vset.pattern.permute.xlu0 0
      %979 = vperm.xlu0 %978, %v681
      %v980 = vpop.permute.xlu0 %979
      %983 = vset.pattern.permute.xlu0 0
      %984 = vperm.xlu0 %983, %v683
      %v985 = vpop.permute.xlu0 %984
      %988 = vset.pattern.permute.xlu0 0
      %989 = vperm.xlu0 %988, %v685
      %v990 = vpop.permute.xlu0 %989
      %993 = vset.pattern.permute.xlu0 0
      %994 = vperm.xlu0 %993, %v687
      %v995 = vpop.permute.xlu0 %994
      %998 = vset.pattern.permute.xlu0 0
      %999 = vperm.xlu0 %998, %v689
      %v1000 = vpop.permute.xlu0 %999
      %1003 = vset.pattern.permute.xlu0 0
      %1004 = vperm.xlu0 %1003, %v691
      %v1005 = vpop.permute.xlu0 %1004
      %1008 = vset.pattern.permute.xlu0 0
      %1009 = vperm.xlu0 %1008, %v693
      %v1010 = vpop.permute.xlu0 %1009
      %1013 = vset.pattern.permute.xlu0 0
      %1014 = vperm.xlu0 %1013, %v695
      %v1015 = vpop.permute.xlu0 %1014
      %v1017 = vmul.f32 %v940, %v921
      %v1018 = vmul.f32 %v945, %v922
      %v1019 = vmul.f32 %v950, %v923
      %v1020 = vmul.f32 %v955, %v924
      %v1021 = vmul.f32 %v960, %v925
      %v1022 = vmul.f32 %v965, %v926
      %v1023 = vmul.f32 %v970, %v927
      %v1024 = vmul.f32 %v975, %v928
      %v1025 = vmul.f32 %v980, %v929
      %v1026 = vmul.f32 %v985, %v930
      %v1027 = vmul.f32 %v990, %v931
      %v1028 = vmul.f32 %v995, %v932
      %v1029 = vmul.f32 %v1000, %v933
      %v1030 = vmul.f32 %v1005, %v934
      %v1031 = vmul.f32 %v1010, %v935
      %v1032 = vmul.f32 %v1015, %v936
      %v1033 = vpack.c.bf16 %v795, %v793
      %v1034 = vpack.c.bf16 %v799, %v797
      %v1035 = vpack.c.bf16 %v803, %v801
      %v1036 = vpack.c.bf16 %v807, %v805
      %v1037 = vpack.c.bf16 %v811, %v809
      %v1038 = vpack.c.bf16 %v815, %v813
      %v1039 = vpack.c.bf16 %v819, %v817
      %v1040 = vpack.c.bf16 %v823, %v821
      %v1041 = vld [vmem:[%s277] sm:$0xf]
      %v1042 = vld [vmem:[%s277 + $0x4] sm:$0xf]
      %v1043 = vld [vmem:[%s277 + $0x8] sm:$0xf]
      %v1044 = vld [vmem:[%s277 + $0xc] sm:$0xf]
      %v1045 = vld [vmem:[%s277 + $0x10] sm:$0xf]
      %v1046 = vld [vmem:[%s277 + $0x14] sm:$0xf]
      %v1047 = vld [vmem:[%s277 + $0x18] sm:$0xf]
      %v1048 = vld [vmem:[%s277 + $0x1c] sm:$0xf]
      %v1049 = vld [vmem:[%s277 + $0x20] sm:$0xf]
      %v1050 = vld [vmem:[%s277 + $0x24] sm:$0xf]
      %v1051 = vld [vmem:[%s277 + $0x28] sm:$0xf]
      %v1052 = vld [vmem:[%s277 + $0x2c] sm:$0xf]
      %v1053 = vld [vmem:[%s277 + $0x30] sm:$0xf]
      %v1054 = vld [vmem:[%s277 + $0x34] sm:$0xf]
      %v1055 = vld [vmem:[%s277 + $0x38] sm:$0xf]
      %v1056 = vld [vmem:[%s277 + $0x3c] sm:$0xf]
      %v1073 = vunpack.c.l.b16 %v1041
      %v1074 = vunpack.c.l.b16 %v1042
      %v1075 = vunpack.c.l.b16 %v1043
      %v1076 = vunpack.c.l.b16 %v1044
      %v1077 = vunpack.c.l.b16 %v1045
      %v1078 = vunpack.c.l.b16 %v1046
      %v1079 = vunpack.c.l.b16 %v1047
      %v1080 = vunpack.c.l.b16 %v1048
      %v1081 = vunpack.c.l.b16 %v1049
      %v1082 = vunpack.c.l.b16 %v1050
      %v1083 = vunpack.c.l.b16 %v1051
      %v1084 = vunpack.c.l.b16 %v1052
      %v1085 = vunpack.c.l.b16 %v1053
      %v1086 = vunpack.c.l.b16 %v1054
      %v1087 = vunpack.c.l.b16 %v1055
      %v1088 = vunpack.c.l.b16 %v1056
      %v1089 = vpack.c.b16 %v1074, %v1073
      %v1090 = vpack.c.b16 %v1076, %v1075
      %v1091 = vpack.c.b16 %v1078, %v1077
      %v1092 = vpack.c.b16 %v1080, %v1079
      %v1093 = vpack.c.b16 %v1082, %v1081
      %v1094 = vpack.c.b16 %v1084, %v1083
      %v1095 = vpack.c.b16 %v1086, %v1085
      %v1096 = vpack.c.b16 %v1088, %v1087
      %1105 = vmatprep.subr.bf16.mxu0 0
      %1106 = vmatpush1.bf16.msra.mxu0 %v1089
      %1107 = vmatprep.subr.bf16.mxu0 0
      %1108 = vmatpush1.bf16.msra.mxu0 %v1090
      %1109 = vmatprep.subr.bf16.mxu0 0
      %1110 = vmatpush1.bf16.msra.mxu0 %v1091
      %1111 = vmatprep.subr.bf16.mxu0 0
      %1112 = vmatpush1.bf16.msra.mxu0 %v1092
      %1113 = vmatprep.subr.bf16.mxu0 0
      %1114 = vmatpush1.bf16.msra.mxu0 %v1093
      %1115 = vmatprep.subr.bf16.mxu0 0
      %1116 = vmatpush1.bf16.msra.mxu0 %v1094
      %1117 = vmatprep.subr.bf16.mxu0 0
      %1118 = vmatpush1.bf16.msra.mxu0 %v1095
      %1119 = vmatprep.subr.bf16.mxu0 0
      %1120 = vmatpush1.bf16.msra.mxu0 %v1096
      %1121 = vmatprep.subr.bf16.mxu0 0
      %1122 = vmatpush1.bf16.msra.mxu0 0
      %1123 = vmatprep.subr.bf16.mxu0 0
      %1124 = vmatpush1.bf16.msra.mxu0 0
      %1125 = vmatprep.subr.bf16.mxu0 0
      %1126 = vmatpush1.bf16.msra.mxu0 0
      %1127 = vmatprep.subr.bf16.mxu0 0
      %1128 = vmatpush1.bf16.msra.mxu0 0
      %1129 = vmatprep.subr.bf16.mxu0 0
      %1130 = vmatpush1.bf16.msra.mxu0 0
      %1131 = vmatprep.subr.bf16.mxu0 0
      %1132 = vmatpush1.bf16.msra.mxu0 0
      %1133 = vmatprep.subr.bf16.mxu0 0
      %1134 = vmatpush1.bf16.msra.mxu0 0
      %1135 = vmatprep.subr.bf16.mxu0 0
      %1136 = vmatpush1.bf16.msra.mxu0 0
      %1137 = vmatprep.mubr.bf16.mxu0 0
      %1138 = vmatmul.mubr.bf16.gmra.mrb[0].mxu0 %v1033
      %v1139 = vpop.f32.mrb[0].mxu0
      %v1140 = vadd.f32 0.0, %v1139
      %v1141 = vpop.f32.mrb[0].mxu0
      %v1142 = vpop.f32.mrb[0].mxu0
      %v1143 = vadd.f32 0.0, %v1142
      %v1144 = vpop.f32.mrb[0].mxu0
      %1145 = vmatprep.mubr.bf16.mxu0 0
      %1146 = vmatmul.mubr.bf16.gmra.mrb[0].mxu0 %v1034
      %v1147 = vpop.f32.mrb[0].mxu0
      %v1148 = vadd.f32 0.0, %v1147
      %v1149 = vpop.f32.mrb[0].mxu0
      %v1150 = vpop.f32.mrb[0].mxu0
      %v1151 = vadd.f32 0.0, %v1150
      %v1152 = vpop.f32.mrb[0].mxu0
      %1153 = vmatprep.mubr.bf16.mxu0 0
      %1154 = vmatmul.mubr.bf16.gmra.mrb[0].mxu0 %v1035
      %v1155 = vpop.f32.mrb[0].mxu0
      %v1156 = vadd.f32 0.0, %v1155
      %v1157 = vpop.f32.mrb[0].mxu0
      %v1158 = vpop.f32.mrb[0].mxu0
      %v1159 = vadd.f32 0.0, %v1158
      %v1160 = vpop.f32.mrb[0].mxu0
      %1161 = vmatprep.mubr.bf16.mxu0 0
      %1162 = vmatmul.mubr.bf16.gmra.mrb[0].mxu0 %v1036
      %v1163 = vpop.f32.mrb[0].mxu0
      %v1164 = vadd.f32 0.0, %v1163
      %v1165 = vpop.f32.mrb[0].mxu0
      %v1166 = vpop.f32.mrb[0].mxu0
      %v1167 = vadd.f32 0.0, %v1166
      %v1168 = vpop.f32.mrb[0].mxu0
      %1169 = vmatprep.mubr.bf16.mxu0 0
      %1170 = vmatmul.mubr.bf16.gmra.mrb[0].mxu0 %v1037
      %v1171 = vpop.f32.mrb[0].mxu0
      %v1172 = vadd.f32 0.0, %v1171
      %v1173 = vpop.f32.mrb[0].mxu0
      %v1174 = vpop.f32.mrb[0].mxu0
      %v1175 = vadd.f32 0.0, %v1174
      %v1176 = vpop.f32.mrb[0].mxu0
      %1177 = vmatprep.mubr.bf16.mxu0 0
      %1178 = vmatmul.mubr.bf16.gmra.mrb[0].mxu0 %v1038
      %v1179 = vpop.f32.mrb[0].mxu0
      %v1180 = vadd.f32 0.0, %v1179
      %v1181 = vpop.f32.mrb[0].mxu0
      %v1182 = vpop.f32.mrb[0].mxu0
      %v1183 = vadd.f32 0.0, %v1182
      %v1184 = vpop.f32.mrb[0].mxu0
      %1185 = vmatprep.mubr.bf16.mxu0 0
      %1186 = vmatmul.mubr.bf16.gmra.mrb[0].mxu0 %v1039
      %v1187 = vpop.f32.mrb[0].mxu0
      %v1188 = vadd.f32 0.0, %v1187
      %v1189 = vpop.f32.mrb[0].mxu0
      %v1190 = vpop.f32.mrb[0].mxu0
      %v1191 = vadd.f32 0.0, %v1190
      %v1192 = vpop.f32.mrb[0].mxu0
      %1193 = vmatprep.mubr.bf16.mxu0 0
      %1194 = vmatmul.mubr.bf16.gmra.mrb[0].mxu0 %v1040
      %v1195 = vpop.f32.mrb[0].mxu0
      %v1196 = vadd.f32 0.0, %v1195
      %v1197 = vpop.f32.mrb[0].mxu0
      %v1198 = vpop.f32.mrb[0].mxu0
      %v1199 = vadd.f32 0.0, %v1198
      %v1200 = vpop.f32.mrb[0].mxu0
      %1201 = vdwg.mxu0
      %v1202 = vadd.f32 %v1017, %v1140
      %v1203 = vadd.f32 %v1018, %v1143
      %v1204 = vadd.f32 %v1019, %v1148
      %v1205 = vadd.f32 %v1020, %v1151
      %v1206 = vadd.f32 %v1021, %v1156
      %v1207 = vadd.f32 %v1022, %v1159
      %v1208 = vadd.f32 %v1023, %v1164
      %v1209 = vadd.f32 %v1024, %v1167
      %v1210 = vadd.f32 %v1025, %v1172
      %v1211 = vadd.f32 %v1026, %v1175
      %v1212 = vadd.f32 %v1027, %v1180
      %v1213 = vadd.f32 %v1028, %v1183
      %v1214 = vadd.f32 %v1029, %v1188
      %v1215 = vadd.f32 %v1030, %v1191
      %v1216 = vadd.f32 %v1031, %v1196
      %v1217 = vadd.f32 %v1032, %v1199
      %1218 = vst [vmem:[#allocation4] sm:$0xff] %v1202
      %1219 = vst [vmem:[#allocation4 + $0x8] sm:$0xff] %v1203
      %1220 = vst [vmem:[#allocation4 + $0x10] sm:$0xff] %v1204
      %1221 = vst [vmem:[#allocation4 + $0x18] sm:$0xff] %v1205
      %1222 = vst [vmem:[#allocation4 + $0x20] sm:$0xff] %v1206
      %1223 = vst [vmem:[#allocation4 + $0x28] sm:$0xff] %v1207
      %1224 = vst [vmem:[#allocation4 + $0x30] sm:$0xff] %v1208
      %1225 = vst [vmem:[#allocation4 + $0x38] sm:$0xff] %v1209
      %1226 = vst [vmem:[#allocation4 + $0x40] sm:$0xff] %v1210
      %1227 = vst [vmem:[#allocation4 + $0x48] sm:$0xff] %v1211
      %1228 = vst [vmem:[#allocation4 + $0x50] sm:$0xff] %v1212
      %1229 = vst [vmem:[#allocation4 + $0x58] sm:$0xff] %v1213
      %1230 = vst [vmem:[#allocation4 + $0x60] sm:$0xff] %v1214
      %1231 = vst [vmem:[#allocation4 + $0x68] sm:$0xff] %v1215
      %1232 = vst [vmem:[#allocation4 + $0x70] sm:$0xff] %v1216
      %1233 = vst [vmem:[#allocation4 + $0x78] sm:$0xff] %v1217
      %1234 = vst.msk [vmem:[#allocation2] sm:$0xff] %vm904, %v632
      %1235 = vst.msk [vmem:[#allocation2 + $0x8] sm:$0xff] %vm904, %v633
      %1236 = vst.msk [vmem:[#allocation2 + $0x10] sm:$0xff] %vm904, %v634
      %1237 = vst.msk [vmem:[#allocation2 + $0x18] sm:$0xff] %vm904, %v635
      %1238 = vst.msk [vmem:[#allocation2 + $0x20] sm:$0xff] %vm904, %v636
      %1239 = vst.msk [vmem:[#allocation2 + $0x28] sm:$0xff] %vm904, %v637
      %1240 = vst.msk [vmem:[#allocation2 + $0x30] sm:$0xff] %vm904, %v638
      %1241 = vst.msk [vmem:[#allocation2 + $0x38] sm:$0xff] %vm904, %v639
      %1242 = vst.msk [vmem:[#allocation2 + $0x40] sm:$0xff] %vm904, %v640
      %1243 = vst.msk [vmem:[#allocation2 + $0x48] sm:$0xff] %vm904, %v641
      %1244 = vst.msk [vmem:[#allocation2 + $0x50] sm:$0xff] %vm904, %v642
      %1245 = vst.msk [vmem:[#allocation2 + $0x58] sm:$0xff] %vm904, %v643
      %1246 = vst.msk [vmem:[#allocation2 + $0x60] sm:$0xff] %vm904, %v644
      %1247 = vst.msk [vmem:[#allocation2 + $0x68] sm:$0xff] %vm904, %v645
      %1248 = vst.msk [vmem:[#allocation2 + $0x70] sm:$0xff] %vm904, %v646
      %1249 = vst.msk [vmem:[#allocation2 + $0x78] sm:$0xff] %vm904, %v647
      // Predicated region
      $region37: #{attention_fuse_forward.3} parent=31 // pred_check
        %p1250 = pneg %p290
      $region38: #{attention_fuse_forward.3} parent=31 // pred_check_branch
        %1252 = sbr.rel (%p1250) target = $region40
      $region39: #{attention_fuse_forward.3} parent=31 // pred_region
        %v1253 = vld [vmem:[#allocation3] sm:$0xff]
        %v1254 = vld [vmem:[#allocation3 + $0x8] sm:$0xff]
        %v1255 = vld [vmem:[#allocation3 + $0x10] sm:$0xff]
        %v1256 = vld [vmem:[#allocation3 + $0x18] sm:$0xff]
        %v1257 = vld [vmem:[#allocation3 + $0x20] sm:$0xff]
        %v1258 = vld [vmem:[#allocation3 + $0x28] sm:$0xff]
        %v1259 = vld [vmem:[#allocation3 + $0x30] sm:$0xff]
        %v1260 = vld [vmem:[#allocation3 + $0x38] sm:$0xff]
        %v1261 = vld [vmem:[#allocation3 + $0x40] sm:$0xff]
        %v1262 = vld [vmem:[#allocation3 + $0x48] sm:$0xff]
        %v1263 = vld [vmem:[#allocation3 + $0x50] sm:$0xff]
        %v1264 = vld [vmem:[#allocation3 + $0x58] sm:$0xff]
        %v1265 = vld [vmem:[#allocation3 + $0x60] sm:$0xff]
        %v1266 = vld [vmem:[#allocation3 + $0x68] sm:$0xff]
        %v1267 = vld [vmem:[#allocation3 + $0x70] sm:$0xff]
        %v1268 = vld [vmem:[#allocation3 + $0x78] sm:$0xff]
        %v1269 = vrcp.pop %v1253
        %v1270 = vrcp.pop %v1254
        %v1271 = vrcp.pop %v1255
        %v1272 = vrcp.pop %v1256
        %v1273 = vrcp.pop %v1257
        %v1274 = vrcp.pop %v1258
        %v1275 = vrcp.pop %v1259
        %v1276 = vrcp.pop %v1260
        %v1277 = vrcp.pop %v1261
        %v1278 = vrcp.pop %v1262
        %v1279 = vrcp.pop %v1263
        %v1280 = vrcp.pop %v1264
        %v1281 = vrcp.pop %v1265
        %v1282 = vrcp.pop %v1266
        %v1283 = vrcp.pop %v1267
        %v1284 = vrcp.pop %v1268
        %v1285 = vld [vmem:[#allocation4] sm:$0xff]
        %v1286 = vld [vmem:[#allocation4 + $0x8] sm:$0xff]
        %v1287 = vld [vmem:[#allocation4 + $0x10] sm:$0xff]
        %v1288 = vld [vmem:[#allocation4 + $0x18] sm:$0xff]
        %v1289 = vld [vmem:[#allocation4 + $0x20] sm:$0xff]
        %v1290 = vld [vmem:[#allocation4 + $0x28] sm:$0xff]
        %v1291 = vld [vmem:[#allocation4 + $0x30] sm:$0xff]
        %v1292 = vld [vmem:[#allocation4 + $0x38] sm:$0xff]
        %v1293 = vld [vmem:[#allocation4 + $0x40] sm:$0xff]
        %v1294 = vld [vmem:[#allocation4 + $0x48] sm:$0xff]
        %v1295 = vld [vmem:[#allocation4 + $0x50] sm:$0xff]
        %v1296 = vld [vmem:[#allocation4 + $0x58] sm:$0xff]
        %v1297 = vld [vmem:[#allocation4 + $0x60] sm:$0xff]
        %v1298 = vld [vmem:[#allocation4 + $0x68] sm:$0xff]
        %v1299 = vld [vmem:[#allocation4 + $0x70] sm:$0xff]
        %v1300 = vld [vmem:[#allocation4 + $0x78] sm:$0xff]
        %1302 = vset.pattern.permute.xlu0 0
        %1303 = vperm.xlu0 %1302, %v1269
        %v1304 = vpop.permute.xlu0 %1303
        %1307 = vset.pattern.permute.xlu0 0
        %1308 = vperm.xlu0 %1307, %v1270
        %v1309 = vpop.permute.xlu0 %1308
        %1312 = vset.pattern.permute.xlu0 0
        %1313 = vperm.xlu0 %1312, %v1271
        %v1314 = vpop.permute.xlu0 %1313
        %1317 = vset.pattern.permute.xlu0 0
        %1318 = vperm.xlu0 %1317, %v1272
        %v1319 = vpop.permute.xlu0 %1318
        %1322 = vset.pattern.permute.xlu0 0
        %1323 = vperm.xlu0 %1322, %v1273
        %v1324 = vpop.permute.xlu0 %1323
        %1327 = vset.pattern.permute.xlu0 0
        %1328 = vperm.xlu0 %1327, %v1274
        %v1329 = vpop.permute.xlu0 %1328
        %1332 = vset.pattern.permute.xlu0 0
        %1333 = vperm.xlu0 %1332, %v1275
        %v1334 = vpop.permute.xlu0 %1333
        %1337 = vset.pattern.permute.xlu0 0
        %1338 = vperm.xlu0 %1337, %v1276
        %v1339 = vpop.permute.xlu0 %1338
        %1342 = vset.pattern.permute.xlu0 0
        %1343 = vperm.xlu0 %1342, %v1277
        %v1344 = vpop.permute.xlu0 %1343
        %1347 = vset.pattern.permute.xlu0 0
        %1348 = vperm.xlu0 %1347, %v1278
        %v1349 = vpop.permute.xlu0 %1348
        %1352 = vset.pattern.permute.xlu0 0
        %1353 = vperm.xlu0 %1352, %v1279
        %v1354 = vpop.permute.xlu0 %1353
        %1357 = vset.pattern.permute.xlu0 0
        %1358 = vperm.xlu0 %1357, %v1280
        %v1359 = vpop.permute.xlu0 %1358
        %1362 = vset.pattern.permute.xlu0 0
        %1363 = vperm.xlu0 %1362, %v1281
        %v1364 = vpop.permute.xlu0 %1363
        %1367 = vset.pattern.permute.xlu0 0
        %1368 = vperm.xlu0 %1367, %v1282
        %v1369 = vpop.permute.xlu0 %1368
        %1372 = vset.pattern.permute.xlu0 0
        %1373 = vperm.xlu0 %1372, %v1283
        %v1374 = vpop.permute.xlu0 %1373
        %1377 = vset.pattern.permute.xlu0 0
        %1378 = vperm.xlu0 %1377, %v1284
        %v1379 = vpop.permute.xlu0 %1378
        %v1381 = vmul.f32 %v1285, %v1304
        %v1382 = vmul.f32 %v1286, %v1309
        %v1383 = vmul.f32 %v1287, %v1314
        %v1384 = vmul.f32 %v1288, %v1319
        %v1385 = vmul.f32 %v1289, %v1324
        %v1386 = vmul.f32 %v1290, %v1329
        %v1387 = vmul.f32 %v1291, %v1334
        %v1388 = vmul.f32 %v1292, %v1339
        %v1389 = vmul.f32 %v1293, %v1344
        %v1390 = vmul.f32 %v1294, %v1349
        %v1391 = vmul.f32 %v1295, %v1354
        %v1392 = vmul.f32 %v1296, %v1359
        %v1393 = vmul.f32 %v1297, %v1364
        %v1394 = vmul.f32 %v1298, %v1369
        %v1395 = vmul.f32 %v1299, %v1374
        %v1396 = vmul.f32 %v1300, %v1379
        %1397 = vst [vmem:[%s287] sm:$0xff] %v1381
        %1398 = vst [vmem:[%s287 + $0x8] sm:$0xff] %v1382
        %1399 = vst [vmem:[%s287 + $0x10] sm:$0xff] %v1383
        %1400 = vst [vmem:[%s287 + $0x18] sm:$0xff] %v1384
        %1401 = vst [vmem:[%s287 + $0x20] sm:$0xff] %v1385
        %1402 = vst [vmem:[%s287 + $0x28] sm:$0xff] %v1386
        %1403 = vst [vmem:[%s287 + $0x30] sm:$0xff] %v1387
        %1404 = vst [vmem:[%s287 + $0x38] sm:$0xff] %v1388
        %1405 = vst [vmem:[%s287 + $0x40] sm:$0xff] %v1389
        %1406 = vst [vmem:[%s287 + $0x48] sm:$0xff] %v1390
        %1407 = vst [vmem:[%s287 + $0x50] sm:$0xff] %v1391
        %1408 = vst [vmem:[%s287 + $0x58] sm:$0xff] %v1392
        %1409 = vst [vmem:[%s287 + $0x60] sm:$0xff] %v1393
        %1410 = vst [vmem:[%s287 + $0x68] sm:$0xff] %v1394
        %1411 = vst [vmem:[%s287 + $0x70] sm:$0xff] %v1395
        %1412 = vst [vmem:[%s287 + $0x78] sm:$0xff] %v1396
      $region40: #{attention_fuse_forward.3} parent=31 // pred_fallthru
        _
      %s1413 = smul.u32 16, %s20
      %p1414 = scmp.lt.s32.totalorder %s19, 1
      %s1415 = scalar_select %p1414, %s19, 1
      %p1416 = scmp.lt.s32.totalorder %s1413, 15
      %s1417 = scalar_select %p1416, %s1413, 15
      %s1418 = smul.addr %s1415, 16
      %s1419 = sadd.s32 %s1417, %s1418
      %s1420 = smul.addr %s1419, 8
      %s1421 = scalar_lea.vmem %s3, %s1420
      // Predicated region
      $region41: #{attention_fuse_forward.3} parent=31 // pred_check
        %p1422 = pneg %p137
      $region42: #{attention_fuse_forward.3} parent=31 // pred_check_branch
        %1424 = sbr.rel (%p1422) target = $region44
      $region43: #{attention_fuse_forward.3} parent=31 // pred_region
        %s1425 = smul.u32 16, %s20
      $region44: #{attention_fuse_forward.3} parent=31 // pred_fallthru
        _
    $region32: #{attention_fuse_forward.3} parent=5 // pred_fallthru
      _
    %p1426 = scmp.le.s32.totalorder 2, %s9
    // Predicated region
    $region45: #{attention_fuse_forward.3} parent=5 // pred_check
      %p1427 = pneg %p1426
    $region46: #{attention_fuse_forward.3} parent=5 // pred_check_branch
      %1429 = sbr.rel (%p1427) target = $region48
    $region47: #{attention_fuse_forward.3} parent=5 // pred_region
      %s1430 = ssub.s32 %s9, 2
      // Predicated region
      $region49: #{attention_fuse_forward.3} parent=47 // pred_check
        %p1431 = pneg %p143
      $region50: #{attention_fuse_forward.3} parent=47 // pred_check_branch
        %1433 = sbr.rel (%p1431) target = $region52
      $region51: #{attention_fuse_forward.3} parent=47 // pred_region
        %s1434 = smul.u32 16, %s23
        %p1435 = scmp.lt.s32.totalorder %s22, 1
        %s1436 = scalar_select %p1435, %s22, 1
        %p1437 = scmp.lt.s32.totalorder %s1434, 15
        %s1438 = scalar_select %p1437, %s1434, 15
        %s1439 = smul.addr %s1436, 16
        %s1440 = sadd.s32 %s1438, %s1439
        %s1441 = smul.addr %s1440, 8
        %s1442 = scalar_lea.vmem %s3, %s1441
      $region52: #{attention_fuse_forward.3} parent=47 // pred_fallthru
        _
    $region48: #{attention_fuse_forward.3} parent=5 // pred_fallthru
      _
  $region6: #{attention_fuse_forward.3} parent=0 // loop_footer
    %s13 = sadd.s32 1, %s9
  $region7: #{attention_fuse_forward.3} parent=0 // loop_footer_branch
    %8 = sbr.rel target = $region3
  $region8: #{attention_fuse_forward.3} parent=0 // loop_exit
    _

// kernel: attention_fuse_forward.2
$region0: #{attention_fuse_forward.2}
  #allocation0 [shape = 'u32[]', space=smem, size = 0x4, offset = 0x4, fixed_abs, tag = 'smem constant byte address 0x4 - core index']
  #allocation1 [shape = 'u32[144,128]{1,0:T(1,128)}', space=vmem, size = 0x12000, scoped, tag = 'internal scratch']
  %s0 = inlined_call_operand.vmem [shape: bf16[2,128,128], index: 0, kind: input, shape index: {}]
  %s1 = inlined_call_operand.vmem [shape: bf16[2,128,128], index: 1, kind: input, shape index: {}]
  %s2 = inlined_call_operand.vmem [shape: bf16[128,128], index: 2, kind: input, shape index: {}]
  %s3 = inlined_call_operand.vmem [shape: f32[1,128], index: 3, kind: input, shape index: {}]
  %s4 = inlined_call_operand.vmem [shape: bf16[128,128], index: 4, kind: input, shape index: {}]
  %s5 = inlined_call_operand.vmem [shape: f32[1,128], index: 5, kind: input, shape index: {}]
  %s6 = inlined_call_operand.vmem [shape: bf16[128,128], index: 6, kind: input, shape index: {}]
  %s7 = inlined_call_operand.vmem [shape: f32[1,128], index: 7, kind: input, shape index: {}]
  %s8 = inlined_call_operand.vmem [shape: bf16[2,128,128], index: 8, kind: output, shape index: {0}]
  %s9 = inlined_call_operand.vmem [shape: bf16[2,128,128], index: 9, kind: output, shape index: {1}]
  %s10 = inlined_call_operand.vmem [shape: bf16[2,128,128], index: 10, kind: output, shape index: {2}]
  %11 = xla_tuple %s8, %s9, %s10
  %s12 = sld [smem:[#allocation0]]
  $region81: #{attention_fuse_forward.2} parent=0
    _
  %s14 = ssub.s32 1, %s12
  %s15 = scalar_select 0, %s14, %s12
  loop: start=0, step=1, limit=4
  $region2: #{attention_fuse_forward.2} parent=0 // loop_pre_header
    _
  $region3: #{attention_fuse_forward.2} parent=0 // loop_header
    %s17 = sphi 0, %s21
    %p18 = scmp.ge.s32.totalorder %s17, 4
    %s24 = sphi 0, %s36
    %s25 = sphi 0, %s32
    %s26 = sphi 0, %s24
    %s27 = sphi 0, %s25
    %s28 = sphi 0, %s26
    %s29 = sphi 0, %s27
    %s41 = sphi 0, %s43
    %s44 = sphi 0, %s41
    %s45 = sphi 0, %s44
    %s61 = sphi 0, %s45
    %s69 = sphi 0, %s71
    %s72 = sphi 0, %s69
    %s73 = sphi 0, %s72
    %s89 = sphi 0, %s73
    %s93 = sphi 0, %s93
    %s95 = sphi 0, %s93
    %s96 = sphi 0, %s95
    %s110 = sphi 0, %s96
    %s114 = sphi 0, %s114
    %s116 = sphi 0, %s114
    %s117 = sphi 0, %s116
    %s131 = sphi 0, %s117
    %s135 = sphi 0, %s135
    %s137 = sphi 0, %s135
    %s138 = sphi 0, %s137
    %s152 = sphi 0, %s138
    %s156 = sphi 0, %s156
    %s158 = sphi 0, %s156
    %s159 = sphi 0, %s158
    %s173 = sphi 0, %s159
    %s177 = sphi 0, %s177
    %s179 = sphi 0, %s177
    %s180 = sphi 0, %s179
    %s194 = sphi 0, %s180
    %s198 = sphi 0, %s198
    %s200 = sphi 0, %s198
    %s201 = sphi 0, %s200
    %s215 = sphi 0, %s201
    %s223 = sphi 0, %s225
    %s226 = sphi 0, %s223
    %s227 = sphi 0, %s226
    %s243 = sphi 0, %s227
    %s251 = sphi 0, %s253
    %s254 = sphi 0, %s251
    %s255 = sphi 0, %s254
    %s271 = sphi 0, %s255
    %s279 = sphi 0, %s281
    %s282 = sphi 0, %s279
    %s283 = sphi 0, %s282
    %s299 = sphi 0, %s283
  $region4: #{attention_fuse_forward.2} parent=0 // loop_header_branch
    %20 = sbr.rel (%p18) target = $region8
  $region5: #{attention_fuse_forward.2} parent=0 // loop_body
    %s22 = ssub.s32 %s17, 1
    %s23 = ssub.s32 %s17, 2
    %s30 = sadd.s32 1, %s25
    %p31 = scmp.ge.s32.totalorder %s30, 1
    %s32 = scalar_select %p31, 0, %s30
    %s33 = sadd.s32 1, %s24
    %s34 = scalar_select %p31, %s33, %s24
    %p35 = scmp.ge.s32.totalorder %s34, 2
    %s36 = scalar_select %p35, 0, %s34
    %s37 = ssub.s32 %s24, %s36
    %s38 = ssub.s32 %s25, %s32
    %s39 = sor.u32 %s37, %s38
    %p40 = scmp.eq.s32.totalorder %s39, 0
    %s42 = sadd.s32 %s41, 1
    %s43 = scalar_select %p40, %s41, %s42
    %p46 = pneg %p40
    %p47 = scmp.eq.s32.totalorder %s17, 1
    %p48 = por %p46, %p47
    %p49 = scmp.ne.s32.totalorder %s41, %s44
    %p50 = scmp.eq.s32.totalorder %s17, 0
    %p51 = por %p49, %p50
    %p52 = scmp.ne.s32.totalorder %s41, %s44
    %p53 = scmp.eq.s32.totalorder %s22, 1
    %p54 = por %p52, %p53
    %p55 = scmp.ne.s32.totalorder %s44, %s45
    %p56 = scmp.eq.s32.totalorder %s22, 0
    %p57 = por %p55, %p56
    %p58 = scmp.ne.s32.totalorder %s44, %s45
    %p59 = scmp.eq.s32.totalorder %s23, 1
    %p60 = por %p58, %p59
    %p62 = scmp.ne.s32.totalorder %s45, %s61
    %p63 = scmp.eq.s32.totalorder %s23, 0
    %p64 = por %p62, %p63
    %s65 = ssub.s32 %s24, %s36
    %s66 = ssub.s32 %s25, %s32
    %s67 = sor.u32 %s65, %s66
    %p68 = scmp.eq.s32.totalorder %s67, 0
    %s70 = sadd.s32 %s69, 1
    %s71 = scalar_select %p68, %s69, %s70
    %p74 = pneg %p68
    %p75 = scmp.eq.s32.totalorder %s17, 1
    %p76 = por %p74, %p75
    %p77 = scmp.ne.s32.totalorder %s69, %s72
    %p78 = scmp.eq.s32.totalorder %s17, 0
    %p79 = por %p77, %p78
    %p80 = scmp.ne.s32.totalorder %s69, %s72
    %p81 = scmp.eq.s32.totalorder %s22, 1
    %p82 = por %p80, %p81
    %p83 = scmp.ne.s32.totalorder %s72, %s73
    %p84 = scmp.eq.s32.totalorder %s22, 0
    %p85 = por %p83, %p84
    %p86 = scmp.ne.s32.totalorder %s72, %s73
    %p87 = scmp.eq.s32.totalorder %s23, 1
    %p88 = por %p86, %p87
    %p90 = scmp.ne.s32.totalorder %s73, %s89
    %p91 = scmp.eq.s32.totalorder %s23, 0
    %p92 = por %p90, %p91
    %s94 = sadd.s32 %s93, 1
    %p97 = scmp.eq.s32.totalorder %s17, 1
    %p98 = scmp.ne.s32.totalorder %s93, %s95
    %p99 = scmp.eq.s32.totalorder %s17, 0
    %p100 = por %p98, %p99
    %p101 = scmp.ne.s32.totalorder %s93, %s95
    %p102 = scmp.eq.s32.totalorder %s22, 1
    %p103 = por %p101, %p102
    %p104 = scmp.ne.s32.totalorder %s95, %s96
    %p105 = scmp.eq.s32.totalorder %s22, 0
    %p106 = por %p104, %p105
    %p107 = scmp.ne.s32.totalorder %s95, %s96
    %p108 = scmp.eq.s32.totalorder %s23, 1
    %p109 = por %p107, %p108
    %p111 = scmp.ne.s32.totalorder %s96, %s110
    %p112 = scmp.eq.s32.totalorder %s23, 0
    %p113 = por %p111, %p112
    %s115 = sadd.s32 %s114, 1
    %p118 = scmp.eq.s32.totalorder %s17, 1
    %p119 = scmp.ne.s32.totalorder %s114, %s116
    %p120 = scmp.eq.s32.totalorder %s17, 0
    %p121 = por %p119, %p120
    %p122 = scmp.ne.s32.totalorder %s114, %s116
    %p123 = scmp.eq.s32.totalorder %s22, 1
    %p124 = por %p122, %p123
    %p125 = scmp.ne.s32.totalorder %s116, %s117
    %p126 = scmp.eq.s32.totalorder %s22, 0
    %p127 = por %p125, %p126
    %p128 = scmp.ne.s32.totalorder %s116, %s117
    %p129 = scmp.eq.s32.totalorder %s23, 1
    %p130 = por %p128, %p129
    %p132 = scmp.ne.s32.totalorder %s117, %s131
    %p133 = scmp.eq.s32.totalorder %s23, 0
    %p134 = por %p132, %p133
    %s136 = sadd.s32 %s135, 1
    %p139 = scmp.eq.s32.totalorder %s17, 1
    %p140 = scmp.ne.s32.totalorder %s135, %s137
    %p141 = scmp.eq.s32.totalorder %s17, 0
    %p142 = por %p140, %p141
    %p143 = scmp.ne.s32.totalorder %s135, %s137
    %p144 = scmp.eq.s32.totalorder %s22, 1
    %p145 = por %p143, %p144
    %p146 = scmp.ne.s32.totalorder %s137, %s138
    %p147 = scmp.eq.s32.totalorder %s22, 0
    %p148 = por %p146, %p147
    %p149 = scmp.ne.s32.totalorder %s137, %s138
    %p150 = scmp.eq.s32.totalorder %s23, 1
    %p151 = por %p149, %p150
    %p153 = scmp.ne.s32.totalorder %s138, %s152
    %p154 = scmp.eq.s32.totalorder %s23, 0
    %p155 = por %p153, %p154
    %s157 = sadd.s32 %s156, 1
    %p160 = scmp.eq.s32.totalorder %s17, 1
    %p161 = scmp.ne.s32.totalorder %s156, %s158
    %p162 = scmp.eq.s32.totalorder %s17, 0
    %p163 = por %p161, %p162
    %p164 = scmp.ne.s32.totalorder %s156, %s158
    %p165 = scmp.eq.s32.totalorder %s22, 1
    %p166 = por %p164, %p165
    %p167 = scmp.ne.s32.totalorder %s158, %s159
    %p168 = scmp.eq.s32.totalorder %s22, 0
    %p169 = por %p167, %p168
    %p170 = scmp.ne.s32.totalorder %s158, %s159
    %p171 = scmp.eq.s32.totalorder %s23, 1
    %p172 = por %p170, %p171
    %p174 = scmp.ne.s32.totalorder %s159, %s173
    %p175 = scmp.eq.s32.totalorder %s23, 0
    %p176 = por %p174, %p175
    %s178 = sadd.s32 %s177, 1
    %p181 = scmp.eq.s32.totalorder %s17, 1
    %p182 = scmp.ne.s32.totalorder %s177, %s179
    %p183 = scmp.eq.s32.totalorder %s17, 0
    %p184 = por %p182, %p183
    %p185 = scmp.ne.s32.totalorder %s177, %s179
    %p186 = scmp.eq.s32.totalorder %s22, 1
    %p187 = por %p185, %p186
    %p188 = scmp.ne.s32.totalorder %s179, %s180
    %p189 = scmp.eq.s32.totalorder %s22, 0
    %p190 = por %p188, %p189
    %p191 = scmp.ne.s32.totalorder %s179, %s180
    %p192 = scmp.eq.s32.totalorder %s23, 1
    %p193 = por %p191, %p192
    %p195 = scmp.ne.s32.totalorder %s180, %s194
    %p196 = scmp.eq.s32.totalorder %s23, 0
    %p197 = por %p195, %p196
    %s199 = sadd.s32 %s198, 1
    %p202 = scmp.eq.s32.totalorder %s17, 1
    %p203 = scmp.ne.s32.totalorder %s198, %s200
    %p204 = scmp.eq.s32.totalorder %s17, 0
    %p205 = por %p203, %p204
    %p206 = scmp.ne.s32.totalorder %s198, %s200
    %p207 = scmp.eq.s32.totalorder %s22, 1
    %p208 = por %p206, %p207
    %p209 = scmp.ne.s32.totalorder %s200, %s201
    %p210 = scmp.eq.s32.totalorder %s22, 0
    %p211 = por %p209, %p210
    %p212 = scmp.ne.s32.totalorder %s200, %s201
    %p213 = scmp.eq.s32.totalorder %s23, 1
    %p214 = por %p212, %p213
    %p216 = scmp.ne.s32.totalorder %s201, %s215
    %p217 = scmp.eq.s32.totalorder %s23, 0
    %p218 = por %p216, %p217
    %s219 = ssub.s32 %s24, %s36
    %s220 = ssub.s32 %s25, %s32
    %s221 = sor.u32 %s219, %s220
    %p222 = scmp.eq.s32.totalorder %s221, 0
    %s224 = sadd.s32 %s223, 1
    %s225 = scalar_select %p222, %s223, %s224
    %p228 = pneg %p222
    %p229 = scmp.eq.s32.totalorder %s17, 1
    %p230 = por %p228, %p229
    %p231 = scmp.ne.s32.totalorder %s223, %s226
    %p232 = scmp.eq.s32.totalorder %s17, 0
    %p233 = por %p231, %p232
    %p234 = scmp.ne.s32.totalorder %s223, %s226
    %p235 = scmp.eq.s32.totalorder %s22, 1
    %p236 = por %p234, %p235
    %p237 = scmp.ne.s32.totalorder %s226, %s227
    %p238 = scmp.eq.s32.totalorder %s22, 0
    %p239 = por %p237, %p238
    %p240 = scmp.ne.s32.totalorder %s226, %s227
    %p241 = scmp.eq.s32.totalorder %s23, 1
    %p242 = por %p240, %p241
    %p244 = scmp.ne.s32.totalorder %s227, %s243
    %p245 = scmp.eq.s32.totalorder %s23, 0
    %p246 = por %p244, %p245
    %s247 = ssub.s32 %s24, %s36
    %s248 = ssub.s32 %s25, %s32
    %s249 = sor.u32 %s247, %s248
    %p250 = scmp.eq.s32.totalorder %s249, 0
    %s252 = sadd.s32 %s251, 1
    %s253 = scalar_select %p250, %s251, %s252
    %p256 = pneg %p250
    %p257 = scmp.eq.s32.totalorder %s17, 1
    %p258 = por %p256, %p257
    %p259 = scmp.ne.s32.totalorder %s251, %s254
    %p260 = scmp.eq.s32.totalorder %s17, 0
    %p261 = por %p259, %p260
    %p262 = scmp.ne.s32.totalorder %s251, %s254
    %p263 = scmp.eq.s32.totalorder %s22, 1
    %p264 = por %p262, %p263
    %p265 = scmp.ne.s32.totalorder %s254, %s255
    %p266 = scmp.eq.s32.totalorder %s22, 0
    %p267 = por %p265, %p266
    %p268 = scmp.ne.s32.totalorder %s254, %s255
    %p269 = scmp.eq.s32.totalorder %s23, 1
    %p270 = por %p268, %p269
    %p272 = scmp.ne.s32.totalorder %s255, %s271
    %p273 = scmp.eq.s32.totalorder %s23, 0
    %p274 = por %p272, %p273
    %s275 = ssub.s32 %s24, %s36
    %s276 = ssub.s32 %s25, %s32
    %s277 = sor.u32 %s275, %s276
    %p278 = scmp.eq.s32.totalorder %s277, 0
    %s280 = sadd.s32 %s279, 1
    %s281 = scalar_select %p278, %s279, %s280
    %p284 = pneg %p278
    %p285 = scmp.eq.s32.totalorder %s17, 1
    %p286 = por %p284, %p285
    %p287 = scmp.ne.s32.totalorder %s279, %s282
    %p288 = scmp.eq.s32.totalorder %s17, 0
    %p289 = por %p287, %p288
    %p290 = scmp.ne.s32.totalorder %s279, %s282
    %p291 = scmp.eq.s32.totalorder %s22, 1
    %p292 = por %p290, %p291
    %p293 = scmp.ne.s32.totalorder %s282, %s283
    %p294 = scmp.eq.s32.totalorder %s22, 0
    %p295 = por %p293, %p294
    %p296 = scmp.ne.s32.totalorder %s282, %s283
    %p297 = scmp.eq.s32.totalorder %s23, 1
    %p298 = por %p296, %p297
    %p300 = scmp.ne.s32.totalorder %s283, %s299
    %p301 = scmp.eq.s32.totalorder %s23, 0
    %p302 = por %p300, %p301
    %p303 = scmp.le.s32.totalorder 1, %s17
    %p304 = scmp.lt.s32.totalorder %s17, 3
    %p305 = pnand %p303, %p304
    %p306 = pneg %p305
    // Predicated region
    $region9: #{attention_fuse_forward.2} parent=5 // pred_check
      _
    $region10: #{attention_fuse_forward.2} parent=5 // pred_check_branch
      %308 = sbr.rel (%p305) target = $region12
    $region11: #{attention_fuse_forward.2} parent=5 // pred_region
      %s309 = ssub.s32 %s17, 1
      // Predicated region
      $region13: #{attention_fuse_forward.2} parent=11 // pred_check
        %p310 = pneg %p106
      $region14: #{attention_fuse_forward.2} parent=11 // pred_check_branch
        %312 = sbr.rel (%p310) target = $region16
      $region15: #{attention_fuse_forward.2} parent=11 // pred_region
        _
      $region16: #{attention_fuse_forward.2} parent=11 // pred_fallthru
        _
      // Predicated region
      $region17: #{attention_fuse_forward.2} parent=11 // pred_check
        %p313 = pneg %p127
      $region18: #{attention_fuse_forward.2} parent=11 // pred_check_branch
        %315 = sbr.rel (%p313) target = $region20
      $region19: #{attention_fuse_forward.2} parent=11 // pred_region
        _
      $region20: #{attention_fuse_forward.2} parent=11 // pred_fallthru
        _
      // Predicated region
      $region21: #{attention_fuse_forward.2} parent=11 // pred_check
        %p316 = pneg %p148
      $region22: #{attention_fuse_forward.2} parent=11 // pred_check_branch
        %318 = sbr.rel (%p316) target = $region24
      $region23: #{attention_fuse_forward.2} parent=11 // pred_region
        _
      $region24: #{attention_fuse_forward.2} parent=11 // pred_fallthru
        _
      // Predicated region
      $region25: #{attention_fuse_forward.2} parent=11 // pred_check
        %p319 = pneg %p169
      $region26: #{attention_fuse_forward.2} parent=11 // pred_check_branch
        %321 = sbr.rel (%p319) target = $region28
      $region27: #{attention_fuse_forward.2} parent=11 // pred_region
        _
      $region28: #{attention_fuse_forward.2} parent=11 // pred_fallthru
        _
      // Predicated region
      $region29: #{attention_fuse_forward.2} parent=11 // pred_check
        %p322 = pneg %p190
      $region30: #{attention_fuse_forward.2} parent=11 // pred_check_branch
        %324 = sbr.rel (%p322) target = $region32
      $region31: #{attention_fuse_forward.2} parent=11 // pred_region
        _
      $region32: #{attention_fuse_forward.2} parent=11 // pred_fallthru
        _
      // Predicated region
      $region33: #{attention_fuse_forward.2} parent=11 // pred_check
        %p325 = pneg %p211
      $region34: #{attention_fuse_forward.2} parent=11 // pred_check_branch
        %327 = sbr.rel (%p325) target = $region36
      $region35: #{attention_fuse_forward.2} parent=11 // pred_region
        _
      $region36: #{attention_fuse_forward.2} parent=11 // pred_fallthru
        _
    $region12: #{attention_fuse_forward.2} parent=5 // pred_fallthru
      _
    %p328 = scmp.lt.s32.totalorder %s17, 2
    // Predicated region
    $region37: #{attention_fuse_forward.2} parent=5 // pred_check
      %p329 = pneg %p328
    $region38: #{attention_fuse_forward.2} parent=5 // pred_check_branch
      %331 = sbr.rel (%p329) target = $region40
    $region39: #{attention_fuse_forward.2} parent=5 // pred_region
      // Predicated region
      $region41: #{attention_fuse_forward.2} parent=39 // pred_check
        %p332 = pneg %p51
      $region42: #{attention_fuse_forward.2} parent=39 // pred_check_branch
        %334 = sbr.rel (%p332) target = $region44
      $region43: #{attention_fuse_forward.2} parent=39 // pred_region
        %s335 = smul.u32 16, %s25
        %p336 = scmp.lt.s32.totalorder %s24, 1
        %s337 = scalar_select %p336, %s24, 1
        %p338 = scmp.lt.s32.totalorder %s335, 15
        %s339 = scalar_select %p338, %s335, 15
        %s340 = smul.addr %s337, 16
        %s341 = sadd.s32 %s339, %s340
        %s342 = smul.addr %s341, 4
        %s343 = scalar_lea.vmem %s0, %s342
        %s344 = smul.u32 16, %s25
      $region44: #{attention_fuse_forward.2} parent=39 // pred_fallthru
        _
      // Predicated region
      $region45: #{attention_fuse_forward.2} parent=39 // pred_check
        %p345 = pneg %p79
      $region46: #{attention_fuse_forward.2} parent=39 // pred_check_branch
        %347 = sbr.rel (%p345) target = $region48
      $region47: #{attention_fuse_forward.2} parent=39 // pred_region
        %s348 = smul.u32 16, %s25
        %p349 = scmp.lt.s32.totalorder %s24, 1
        %s350 = scalar_select %p349, %s24, 1
        %p351 = scmp.lt.s32.totalorder %s348, 15
        %s352 = scalar_select %p351, %s348, 15
        %s353 = smul.addr %s350, 16
        %s354 = sadd.s32 %s352, %s353
        %s355 = smul.addr %s354, 4
        %s356 = scalar_lea.vmem %s1, %s355
        %s357 = smul.u32 16, %s25
      $region48: #{attention_fuse_forward.2} parent=39 // pred_fallthru
        _
    $region40: #{attention_fuse_forward.2} parent=5 // pred_fallthru
      _
    %p358 = scmp.le.s32.totalorder 1, %s17
    %p359 = scmp.lt.s32.totalorder %s17, 3
    %p360 = pnand %p358, %p359
    %p361 = pneg %p360
    // Predicated region
    $region49: #{attention_fuse_forward.2} parent=5 // pred_check
      _
    $region50: #{attention_fuse_forward.2} parent=5 // pred_check_branch
      %363 = sbr.rel (%p360) target = $region52
    $region51: #{attention_fuse_forward.2} parent=5 // pred_region
      %s364 = ssub.s32 %s17, 1
      %s365 = smul.u32 16, %s27
      %p366 = scmp.lt.s32.totalorder %s26, 1
      %s367 = scalar_select %p366, %s26, 1
      %p368 = scmp.lt.s32.totalorder %s365, 15
      %s369 = scalar_select %p368, %s365, 15
      %s370 = smul.addr %s367, 16
      %s371 = sadd.s32 %s369, %s370
      %s372 = smul.addr %s371, 4
      %s373 = scalar_lea.vmem %s0, %s372
      %p374 = pneg %p57
      %p375 = pneg %p54
      %s376 = smul.u32 16, %s27
      %p377 = scmp.lt.s32.totalorder %s26, 1
      %s378 = scalar_select %p377, %s26, 1
      %p379 = scmp.lt.s32.totalorder %s376, 15
      %s380 = scalar_select %p379, %s376, 15
      %s381 = smul.addr %s378, 16
      %s382 = sadd.s32 %s380, %s381
      %s383 = smul.addr %s382, 4
      %s384 = scalar_lea.vmem %s1, %s383
      %p385 = pneg %p85
      %p386 = pneg %p82
      %p387 = pneg %p106
      %p388 = pneg %p103
      %p389 = pneg %p127
      %p390 = pneg %p124
      %p391 = pneg %p148
      %p392 = pneg %p145
      %p393 = pneg %p169
      %p394 = pneg %p166
      %p395 = pneg %p190
      %p396 = pneg %p187
      %p397 = pneg %p211
      %p398 = pneg %p208
      %p399 = pneg %p239
      %p400 = pneg %p236
      %s401 = smul.u32 16, %s27
      %p402 = scmp.lt.s32.totalorder %s26, 1
      %s403 = scalar_select %p402, %s26, 1
      %p404 = scmp.lt.s32.totalorder %s401, 15
      %s405 = scalar_select %p404, %s401, 15
      %s406 = smul.addr %s403, 16
      %s407 = sadd.s32 %s405, %s406
      %s408 = smul.addr %s407, 4
      %s409 = scalar_lea.vmem %s8, %s408
      %p410 = pneg %p267
      %p411 = pneg %p264
      %s412 = smul.u32 16, %s27
      %p413 = scmp.lt.s32.totalorder %s26, 1
      %s414 = scalar_select %p413, %s26, 1
      %p415 = scmp.lt.s32.totalorder %s412, 15
      %s416 = scalar_select %p415, %s412, 15
      %s417 = smul.addr %s414, 16
      %s418 = sadd.s32 %s416, %s417
      %s419 = smul.addr %s418, 4
      %s420 = scalar_lea.vmem %s9, %s419
      %p421 = pneg %p295
      %p422 = pneg %p292
      %s423 = smul.u32 16, %s27
      %p424 = scmp.lt.s32.totalorder %s26, 1
      %s425 = scalar_select %p424, %s26, 1
      %p426 = scmp.lt.s32.totalorder %s423, 15
      %s427 = scalar_select %p426, %s423, 15
      %s428 = smul.addr %s425, 16
      %s429 = sadd.s32 %s427, %s428
      %s430 = smul.addr %s429, 4
      %s431 = scalar_lea.vmem %s10, %s430
      %s432 = smul.u32 16, %s27
      %p433 = scmp.lt.s32.totalorder %s26, 1
      %s434 = scalar_select %p433, %s26, 1
      %p435 = scmp.lt.s32.totalorder %s432, 15
      %s436 = scalar_select %p435, %s432, 15
      %s437 = smul.addr %s434, 16
      %s438 = sadd.s32 %s436, %s437
      %s439 = smul.addr %s438, 4
      %s440 = scalar_lea.vmem %s0, %s439
      %s441 = smul.u32 16, %s27
      %s442 = smul.u32 16, %s27
      %p443 = scmp.lt.s32.totalorder %s26, 1
      %s444 = scalar_select %p443, %s26, 1
      %p445 = scmp.lt.s32.totalorder %s442, 15
      %s446 = scalar_select %p445, %s442, 15
      %s447 = smul.addr %s444, 16
      %s448 = sadd.s32 %s446, %s447
      %s449 = smul.addr %s448, 4
      %s450 = scalar_lea.vmem %s1, %s449
      %s451 = smul.u32 16, %s27
      %s452 = smul.u32 16, %s27
      %p453 = scmp.lt.s32.totalorder %s26, 1
      %s454 = scalar_select %p453, %s26, 1
      %p455 = scmp.lt.s32.totalorder %s452, 15
      %s456 = scalar_select %p455, %s452, 15
      %s457 = smul.addr %s454, 16
      %s458 = sadd.s32 %s456, %s457
      %s459 = smul.addr %s458, 4
      %s460 = scalar_lea.vmem %s8, %s459
      %s461 = smul.u32 16, %s27
      %s462 = smul.u32 16, %s27
      %p463 = scmp.lt.s32.totalorder %s26, 1
      %s464 = scalar_select %p463, %s26, 1
      %p465 = scmp.lt.s32.totalorder %s462, 15
      %s466 = scalar_select %p465, %s462, 15
      %s467 = smul.addr %s464, 16
      %s468 = sadd.s32 %s466, %s467
      %s469 = smul.addr %s468, 4
      %s470 = scalar_lea.vmem %s9, %s469
      %s471 = smul.u32 16, %s27
      %s472 = smul.u32 16, %s27
      %p473 = scmp.lt.s32.totalorder %s26, 1
      %s474 = scalar_select %p473, %s26, 1
      %p475 = scmp.lt.s32.totalorder %s472, 15
      %s476 = scalar_select %p475, %s472, 15
      %s477 = smul.addr %s474, 16
      %s478 = sadd.s32 %s476, %s477
      %s479 = smul.addr %s478, 4
      %s480 = scalar_lea.vmem %s10, %s479
      %s481 = smul.u32 16, %s27
      %v483 = vld [vmem:[%s440] sm:$0xf]
      %v484 = vld [vmem:[%s440 + $0x4] sm:$0xf]
      %v485 = vld [vmem:[%s440 + $0x8] sm:$0xf]
      %v486 = vld [vmem:[%s440 + $0xc] sm:$0xf]
      %v487 = vld [vmem:[%s440 + $0x10] sm:$0xf]
      %v488 = vld [vmem:[%s440 + $0x14] sm:$0xf]
      %v489 = vld [vmem:[%s440 + $0x18] sm:$0xf]
      %v490 = vld [vmem:[%s440 + $0x1c] sm:$0xf]
      %v491 = vld [vmem:[%s440 + $0x20] sm:$0xf]
      %v492 = vld [vmem:[%s440 + $0x24] sm:$0xf]
      %v493 = vld [vmem:[%s440 + $0x28] sm:$0xf]
      %v494 = vld [vmem:[%s440 + $0x2c] sm:$0xf]
      %v495 = vld [vmem:[%s440 + $0x30] sm:$0xf]
      %v496 = vld [vmem:[%s440 + $0x34] sm:$0xf]
      %v497 = vld [vmem:[%s440 + $0x38] sm:$0xf]
      %v498 = vld [vmem:[%s440 + $0x3c] sm:$0xf]
      %v499 = vld [vmem:[%s450] sm:$0xf]
      %v500 = vld [vmem:[%s450 + $0x4] sm:$0xf]
      %v501 = vld [vmem:[%s450 + $0x8] sm:$0xf]
      %v502 = vld [vmem:[%s450 + $0xc] sm:$0xf]
      %v503 = vld [vmem:[%s450 + $0x10] sm:$0xf]
      %v504 = vld [vmem:[%s450 + $0x14] sm:$0xf]
      %v505 = vld [vmem:[%s450 + $0x18] sm:$0xf]
      %v506 = vld [vmem:[%s450 + $0x1c] sm:$0xf]
      %v507 = vld [vmem:[%s450 + $0x20] sm:$0xf]
      %v508 = vld [vmem:[%s450 + $0x24] sm:$0xf]
      %v509 = vld [vmem:[%s450 + $0x28] sm:$0xf]
      %v510 = vld [vmem:[%s450 + $0x2c] sm:$0xf]
      %v511 = vld [vmem:[%s450 + $0x30] sm:$0xf]
      %v512 = vld [vmem:[%s450 + $0x34] sm:$0xf]
      %v513 = vld [vmem:[%s450 + $0x38] sm:$0xf]
      %v514 = vld [vmem:[%s450 + $0x3c] sm:$0xf]
      %v515 = vld [vmem:[%s2] sm:$0xf]
      %v516 = vld [vmem:[%s2 + $0x4] sm:$0xf]
      %v517 = vld [vmem:[%s2 + $0x8] sm:$0xf]
      %v518 = vld [vmem:[%s2 + $0xc] sm:$0xf]
      %v519 = vld [vmem:[%s2 + $0x10] sm:$0xf]
      %v520 = vld [vmem:[%s2 + $0x14] sm:$0xf]
      %v521 = vld [vmem:[%s2 + $0x18] sm:$0xf]
      %v522 = vld [vmem:[%s2 + $0x1c] sm:$0xf]
      %v523 = vld [vmem:[%s2 + $0x20] sm:$0xf]
      %v524 = vld [vmem:[%s2 + $0x24] sm:$0xf]
      %v525 = vld [vmem:[%s2 + $0x28] sm:$0xf]
      %v526 = vld [vmem:[%s2 + $0x2c] sm:$0xf]
      %v527 = vld [vmem:[%s2 + $0x30] sm:$0xf]
      %v528 = vld [vmem:[%s2 + $0x34] sm:$0xf]
      %v529 = vld [vmem:[%s2 + $0x38] sm:$0xf]
      %v530 = vld [vmem:[%s2 + $0x3c] sm:$0xf]
      %v531 = vld [vmem:[%s3] sm:$0x1]
      %v533 = vlaneseq
      %v534 = vshrl.u32 %v533, 7
      %v535 = vsub.s32 0, %v534
      %v536 = vrot.slane %v531, %v535
      %v554 = vunpack.c.l.b16 %v483
      %v555 = vunpack.c.l.b16 %v484
      %v556 = vunpack.c.l.b16 %v485
      %v557 = vunpack.c.l.b16 %v486
      %v558 = vunpack.c.l.b16 %v487
      %v559 = vunpack.c.l.b16 %v488
      %v560 = vunpack.c.l.b16 %v489
      %v561 = vunpack.c.l.b16 %v490
      %v562 = vunpack.c.l.b16 %v491
      %v563 = vunpack.c.l.b16 %v492
      %v564 = vunpack.c.l.b16 %v493
      %v565 = vunpack.c.l.b16 %v494
      %v566 = vunpack.c.l.b16 %v495
      %v567 = vunpack.c.l.b16 %v496
      %v568 = vunpack.c.l.b16 %v497
      %v569 = vunpack.c.l.b16 %v498
      %v570 = vpack.c.b16 %v555, %v554
      %v571 = vpack.c.b16 %v557, %v556
      %v572 = vpack.c.b16 %v559, %v558
      %v573 = vpack.c.b16 %v561, %v560
      %v574 = vpack.c.b16 %v563, %v562
      %v575 = vpack.c.b16 %v565, %v564
      %v576 = vpack.c.b16 %v567, %v566
      %v577 = vpack.c.b16 %v569, %v568
      %v602 = vunpack.c.l.b16 %v515
      %v603 = vunpack.c.l.b16 %v516
      %v604 = vunpack.c.l.b16 %v517
      %v605 = vunpack.c.l.b16 %v518
      %v606 = vunpack.c.l.b16 %v519
      %v607 = vunpack.c.l.b16 %v520
      %v608 = vunpack.c.l.b16 %v521
      %v609 = vunpack.c.l.b16 %v522
      %v610 = vunpack.c.l.b16 %v523
      %v611 = vunpack.c.l.b16 %v524
      %v612 = vunpack.c.l.b16 %v525
      %v613 = vunpack.c.l.b16 %v526
      %v614 = vunpack.c.l.b16 %v527
      %v615 = vunpack.c.l.b16 %v528
      %v616 = vunpack.c.l.b16 %v529
      %v617 = vunpack.c.l.b16 %v530
      %v618 = vpack.c.b16 %v603, %v602
      %v619 = vpack.c.b16 %v605, %v604
      %v620 = vpack.c.b16 %v607, %v606
      %v621 = vpack.c.b16 %v609, %v608
      %v622 = vpack.c.b16 %v611, %v610
      %v623 = vpack.c.b16 %v613, %v612
      %v624 = vpack.c.b16 %v615, %v614
      %v625 = vpack.c.b16 %v617, %v616
      %634 = vmatprep.subr.bf16.mxu0 0
      %635 = vmatpush1.bf16.msra.mxu0 %v618
      %636 = vmatprep.subr.bf16.mxu0 0
      %637 = vmatpush1.bf16.msra.mxu0 %v619
      %638 = vmatprep.subr.bf16.mxu0 0
      %639 = vmatpush1.bf16.msra.mxu0 %v620
      %640 = vmatprep.subr.bf16.mxu0 0
      %641 = vmatpush1.bf16.msra.mxu0 %v621
      %642 = vmatprep.subr.bf16.mxu0 0
      %643 = vmatpush1.bf16.msra.mxu0 %v622
      %644 = vmatprep.subr.bf16.mxu0 0
      %645 = vmatpush1.bf16.msra.mxu0 %v623
      %646 = vmatprep.subr.bf16.mxu0 0
      %647 = vmatpush1.bf16.msra.mxu0 %v624
      %648 = vmatprep.subr.bf16.mxu0 0
      %649 = vmatpush1.bf16.msra.mxu0 %v625
      %650 = vmatprep.subr.bf16.mxu0 0
      %651 = vmatpush1.bf16.msra.mxu0 0
      %652 = vmatprep.subr.bf16.mxu0 0
      %653 = vmatpush1.bf16.msra.mxu0 0
      %654 = vmatprep.subr.bf16.mxu0 0
      %655 = vmatpush1.bf16.msra.mxu0 0
      %656 = vmatprep.subr.bf16.mxu0 0
      %657 = vmatpush1.bf16.msra.mxu0 0
      %658 = vmatprep.subr.bf16.mxu0 0
      %659 = vmatpush1.bf16.msra.mxu0 0
      %660 = vmatprep.subr.bf16.mxu0 0
      %661 = vmatpush1.bf16.msra.mxu0 0
      %662 = vmatprep.subr.bf16.mxu0 0
      %663 = vmatpush1.bf16.msra.mxu0 0
      %664 = vmatprep.subr.bf16.mxu0 0
      %665 = vmatpush1.bf16.msra.mxu0 0
      %666 = vmatprep.mubr.bf16.mxu0 0
      %667 = vmatmul.mubr.bf16.gmra.mrb[0].mxu0 %v570
      %v668 = vpop.f32.mrb[0].mxu0
      %v669 = vadd.f32 %v536, %v668
      %v670 = vpop.f32.mrb[0].mxu0
      %v671 = vpop.f32.mrb[0].mxu0
      %v672 = vadd.f32 %v536, %v671
      %v673 = vpop.f32.mrb[0].mxu0
      %674 = vmatprep.mubr.bf16.mxu0 0
      %675 = vmatmul.mubr.bf16.gmra.mrb[0].mxu0 %v571
      %v676 = vpop.f32.mrb[0].mxu0
      %v677 = vadd.f32 %v536, %v676
      %v678 = vpop.f32.mrb[0].mxu0
      %v679 = vpop.f32.mrb[0].mxu0
      %v680 = vadd.f32 %v536, %v679
      %v681 = vpop.f32.mrb[0].mxu0
      %682 = vmatprep.mubr.bf16.mxu0 0
      %683 = vmatmul.mubr.bf16.gmra.mrb[0].mxu0 %v572
      %v684 = vpop.f32.mrb[0].mxu0
      %v685 = vadd.f32 %v536, %v684
      %v686 = vpop.f32.mrb[0].mxu0
      %v687 = vpop.f32.mrb[0].mxu0
      %v688 = vadd.f32 %v536, %v687
      %v689 = vpop.f32.mrb[0].mxu0
      %690 = vmatprep.mubr.bf16.mxu0 0
      %691 = vmatmul.mubr.bf16.gmra.mrb[0].mxu0 %v573
      %v692 = vpop.f32.mrb[0].mxu0
      %v693 = vadd.f32 %v536, %v692
      %v694 = vpop.f32.mrb[0].mxu0
      %v695 = vpop.f32.mrb[0].mxu0
      %v696 = vadd.f32 %v536, %v695
      %v697 = vpop.f32.mrb[0].mxu0
      %698 = vmatprep.mubr.bf16.mxu0 0
      %699 = vmatmul.mubr.bf16.gmra.mrb[0].mxu0 %v574
      %v700 = vpop.f32.mrb[0].mxu0
      %v701 = vadd.f32 %v536, %v700
      %v702 = vpop.f32.mrb[0].mxu0
      %v703 = vpop.f32.mrb[0].mxu0
      %v704 = vadd.f32 %v536, %v703
      %v705 = vpop.f32.mrb[0].mxu0
      %706 = vmatprep.mubr.bf16.mxu0 0
      %707 = vmatmul.mubr.bf16.gmra.mrb[0].mxu0 %v575
      %v708 = vpop.f32.mrb[0].mxu0
      %v709 = vadd.f32 %v536, %v708
      %v710 = vpop.f32.mrb[0].mxu0
      %v711 = vpop.f32.mrb[0].mxu0
      %v712 = vadd.f32 %v536, %v711
      %v713 = vpop.f32.mrb[0].mxu0
      %714 = vmatprep.mubr.bf16.mxu0 0
      %715 = vmatmul.mubr.bf16.gmra.mrb[0].mxu0 %v576
      %v716 = vpop.f32.mrb[0].mxu0
      %v717 = vadd.f32 %v536, %v716
      %v718 = vpop.f32.mrb[0].mxu0
      %v719 = vpop.f32.mrb[0].mxu0
      %v720 = vadd.f32 %v536, %v719
      %v721 = vpop.f32.mrb[0].mxu0
      %722 = vmatprep.mubr.bf16.mxu0 0
      %723 = vmatmul.mubr.bf16.gmra.mrb[0].mxu0 %v577
      %v724 = vpop.f32.mrb[0].mxu0
      %v725 = vadd.f32 %v536, %v724
      %v726 = vpop.f32.mrb[0].mxu0
      %v727 = vpop.f32.mrb[0].mxu0
      %v728 = vadd.f32 %v536, %v727
      %v729 = vpop.f32.mrb[0].mxu0
      %730 = vdwg.mxu0
      %v731 = vpack.c.bf16 %v672, %v669
      %v732 = vpack.c.bf16 %v680, %v677
      %v733 = vpack.c.bf16 %v688, %v685
      %v734 = vpack.c.bf16 %v696, %v693
      %v735 = vpack.c.bf16 %v704, %v701
      %v736 = vpack.c.bf16 %v712, %v709
      %v737 = vpack.c.bf16 %v720, %v717
      %v738 = vpack.c.bf16 %v728, %v725
      %v747 = vunpack.c.l.b16 %v731
      %v748 = vunpack.c.h.b16 %v731
      %v749 = vunpack.c.l.b16 %v732
      %v750 = vunpack.c.h.b16 %v732
      %v751 = vunpack.c.l.b16 %v733
      %v752 = vunpack.c.h.b16 %v733
      %v753 = vunpack.c.l.b16 %v734
      %v754 = vunpack.c.h.b16 %v734
      %v755 = vunpack.c.l.b16 %v735
      %v756 = vunpack.c.h.b16 %v735
      %v757 = vunpack.c.l.b16 %v736
      %v758 = vunpack.c.h.b16 %v736
      %v759 = vunpack.c.l.b16 %v737
      %v760 = vunpack.c.h.b16 %v737
      %v761 = vunpack.c.l.b16 %v738
      %v762 = vunpack.c.h.b16 %v738
      %v763 = vpack.c.b16 %v747, %v747
      %v764 = vpack.c.b16 %v748, %v748
      %v765 = vpack.c.b16 %v749, %v749
      %v766 = vpack.c.b16 %v750, %v750
      %v767 = vpack.c.b16 %v751, %v751
      %v768 = vpack.c.b16 %v752, %v752
      %v769 = vpack.c.b16 %v753, %v753
      %v770 = vpack.c.b16 %v754, %v754
      %v771 = vpack.c.b16 %v755, %v755
      %v772 = vpack.c.b16 %v756, %v756
      %v773 = vpack.c.b16 %v757, %v757
      %v774 = vpack.c.b16 %v758, %v758
      %v775 = vpack.c.b16 %v759, %v759
      %v776 = vpack.c.b16 %v760, %v760
      %v777 = vpack.c.b16 %v761, %v761
      %v778 = vpack.c.b16 %v762, %v762
      %795 = vst [vmem:[%s460] sm:$0xf] %v763
      %796 = vst [vmem:[%s460 + $0x4] sm:$0xf] %v764
      %797 = vst [vmem:[%s460 + $0x8] sm:$0xf] %v765
      %798 = vst [vmem:[%s460 + $0xc] sm:$0xf] %v766
      %799 = vst [vmem:[%s460 + $0x10] sm:$0xf] %v767
      %800 = vst [vmem:[%s460 + $0x14] sm:$0xf] %v768
      %801 = vst [vmem:[%s460 + $0x18] sm:$0xf] %v769
      %802 = vst [vmem:[%s460 + $0x1c] sm:$0xf] %v770
      %803 = vst [vmem:[%s460 + $0x20] sm:$0xf] %v771
      %804 = vst [vmem:[%s460 + $0x24] sm:$0xf] %v772
      %805 = vst [vmem:[%s460 + $0x28] sm:$0xf] %v773
      %806 = vst [vmem:[%s460 + $0x2c] sm:$0xf] %v774
      %807 = vst [vmem:[%s460 + $0x30] sm:$0xf] %v775
      %808 = vst [vmem:[%s460 + $0x34] sm:$0xf] %v776
      %809 = vst [vmem:[%s460 + $0x38] sm:$0xf] %v777
      %810 = vst [vmem:[%s460 + $0x3c] sm:$0xf] %v778
      %v811 = vld [vmem:[%s4] sm:$0xf]
      %v812 = vld [vmem:[%s4 + $0x4] sm:$0xf]
      %v813 = vld [vmem:[%s4 + $0x8] sm:$0xf]
      %v814 = vld [vmem:[%s4 + $0xc] sm:$0xf]
      %v815 = vld [vmem:[%s4 + $0x10] sm:$0xf]
      %v816 = vld [vmem:[%s4 + $0x14] sm:$0xf]
      %v817 = vld [vmem:[%s4 + $0x18] sm:$0xf]
      %v818 = vld [vmem:[%s4 + $0x1c] sm:$0xf]
      %v819 = vld [vmem:[%s4 + $0x20] sm:$0xf]
      %v820 = vld [vmem:[%s4 + $0x24] sm:$0xf]
      %v821 = vld [vmem:[%s4 + $0x28] sm:$0xf]
      %v822 = vld [vmem:[%s4 + $0x2c] sm:$0xf]
      %v823 = vld [vmem:[%s4 + $0x30] sm:$0xf]
      %v824 = vld [vmem:[%s4 + $0x34] sm:$0xf]
      %v825 = vld [vmem:[%s4 + $0x38] sm:$0xf]
      %v826 = vld [vmem:[%s4 + $0x3c] sm:$0xf]
      %v827 = vld [vmem:[%s5] sm:$0x1]
      %v829 = vlaneseq
      %v830 = vshrl.u32 %v829, 7
      %v831 = vsub.s32 0, %v830
      %v832 = vrot.slane %v827, %v831
      %v850 = vunpack.c.l.b16 %v499
      %v851 = vunpack.c.l.b16 %v500
      %v852 = vunpack.c.l.b16 %v501
      %v853 = vunpack.c.l.b16 %v502
      %v854 = vunpack.c.l.b16 %v503
      %v855 = vunpack.c.l.b16 %v504
      %v856 = vunpack.c.l.b16 %v505
      %v857 = vunpack.c.l.b16 %v506
      %v858 = vunpack.c.l.b16 %v507
      %v859 = vunpack.c.l.b16 %v508
      %v860 = vunpack.c.l.b16 %v509
      %v861 = vunpack.c.l.b16 %v510
      %v862 = vunpack.c.l.b16 %v511
      %v863 = vunpack.c.l.b16 %v512
      %v864 = vunpack.c.l.b16 %v513
      %v865 = vunpack.c.l.b16 %v514
      %v866 = vpack.c.b16 %v851, %v850
      %v867 = vpack.c.b16 %v853, %v852
      %v868 = vpack.c.b16 %v855, %v854
      %v869 = vpack.c.b16 %v857, %v856
      %v870 = vpack.c.b16 %v859, %v858
      %v871 = vpack.c.b16 %v861, %v860
      %v872 = vpack.c.b16 %v863, %v862
      %v873 = vpack.c.b16 %v865, %v864
      %v898 = vunpack.c.l.b16 %v811
      %v899 = vunpack.c.l.b16 %v812
      %v900 = vunpack.c.l.b16 %v813
      %v901 = vunpack.c.l.b16 %v814
      %v902 = vunpack.c.l.b16 %v815
      %v903 = vunpack.c.l.b16 %v816
      %v904 = vunpack.c.l.b16 %v817
      %v905 = vunpack.c.l.b16 %v818
      %v906 = vunpack.c.l.b16 %v819
      %v907 = vunpack.c.l.b16 %v820
      %v908 = vunpack.c.l.b16 %v821
      %v909 = vunpack.c.l.b16 %v822
      %v910 = vunpack.c.l.b16 %v823
      %v911 = vunpack.c.l.b16 %v824
      %v912 = vunpack.c.l.b16 %v825
      %v913 = vunpack.c.l.b16 %v826
      %v914 = vpack.c.b16 %v899, %v898
      %v915 = vpack.c.b16 %v901, %v900
      %v916 = vpack.c.b16 %v903, %v902
      %v917 = vpack.c.b16 %v905, %v904
      %v918 = vpack.c.b16 %v907, %v906
      %v919 = vpack.c.b16 %v909, %v908
      %v920 = vpack.c.b16 %v911, %v910
      %v921 = vpack.c.b16 %v913, %v912
      %930 = vmatprep.subr.bf16.mxu0 0
      %931 = vmatpush1.bf16.msra.mxu0 %v914
      %932 = vmatprep.subr.bf16.mxu0 0
      %933 = vmatpush1.bf16.msra.mxu0 %v915
      %934 = vmatprep.subr.bf16.mxu0 0
      %935 = vmatpush1.bf16.msra.mxu0 %v916
      %936 = vmatprep.subr.bf16.mxu0 0
      %937 = vmatpush1.bf16.msra.mxu0 %v917
      %938 = vmatprep.subr.bf16.mxu0 0
      %939 = vmatpush1.bf16.msra.mxu0 %v918
      %940 = vmatprep.subr.bf16.mxu0 0
      %941 = vmatpush1.bf16.msra.mxu0 %v919
      %942 = vmatprep.subr.bf16.mxu0 0
      %943 = vmatpush1.bf16.msra.mxu0 %v920
      %944 = vmatprep.subr.bf16.mxu0 0
      %945 = vmatpush1.bf16.msra.mxu0 %v921
      %946 = vmatprep.subr.bf16.mxu0 0
      %947 = vmatpush1.bf16.msra.mxu0 0
      %948 = vmatprep.subr.bf16.mxu0 0
      %949 = vmatpush1.bf16.msra.mxu0 0
      %950 = vmatprep.subr.bf16.mxu0 0
      %951 = vmatpush1.bf16.msra.mxu0 0
      %952 = vmatprep.subr.bf16.mxu0 0
      %953 = vmatpush1.bf16.msra.mxu0 0
      %954 = vmatprep.subr.bf16.mxu0 0
      %955 = vmatpush1.bf16.msra.mxu0 0
      %956 = vmatprep.subr.bf16.mxu0 0
      %957 = vmatpush1.bf16.msra.mxu0 0
      %958 = vmatprep.subr.bf16.mxu0 0
      %959 = vmatpush1.bf16.msra.mxu0 0
      %960 = vmatprep.subr.bf16.mxu0 0
      %961 = vmatpush1.bf16.msra.mxu0 0
      %962 = vmatprep.mubr.bf16.mxu0 0
      %963 = vmatmul.mubr.bf16.gmra.mrb[0].mxu0 %v866
      %v964 = vpop.f32.mrb[0].mxu0
      %v965 = vadd.f32 %v832, %v964
      %v966 = vpop.f32.mrb[0].mxu0
      %v967 = vpop.f32.mrb[0].mxu0
      %v968 = vadd.f32 %v832, %v967
      %v969 = vpop.f32.mrb[0].mxu0
      %970 = vmatprep.mubr.bf16.mxu0 0
      %971 = vmatmul.mubr.bf16.gmra.mrb[0].mxu0 %v867
      %v972 = vpop.f32.mrb[0].mxu0
      %v973 = vadd.f32 %v832, %v972
      %v974 = vpop.f32.mrb[0].mxu0
      %v975 = vpop.f32.mrb[0].mxu0
      %v976 = vadd.f32 %v832, %v975
      %v977 = vpop.f32.mrb[0].mxu0
      %978 = vmatprep.mubr.bf16.mxu0 0
      %979 = vmatmul.mubr.bf16.gmra.mrb[0].mxu0 %v868
      %v980 = vpop.f32.mrb[0].mxu0
      %v981 = vadd.f32 %v832, %v980
      %v982 = vpop.f32.mrb[0].mxu0
      %v983 = vpop.f32.mrb[0].mxu0
      %v984 = vadd.f32 %v832, %v983
      %v985 = vpop.f32.mrb[0].mxu0
      %986 = vmatprep.mubr.bf16.mxu0 0
      %987 = vmatmul.mubr.bf16.gmra.mrb[0].mxu0 %v869
      %v988 = vpop.f32.mrb[0].mxu0
      %v989 = vadd.f32 %v832, %v988
      %v990 = vpop.f32.mrb[0].mxu0
      %v991 = vpop.f32.mrb[0].mxu0
      %v992 = vadd.f32 %v832, %v991
      %v993 = vpop.f32.mrb[0].mxu0
      %994 = vmatprep.mubr.bf16.mxu0 0
      %995 = vmatmul.mubr.bf16.gmra.mrb[0].mxu0 %v870
      %v996 = vpop.f32.mrb[0].mxu0
      %v997 = vadd.f32 %v832, %v996
      %v998 = vpop.f32.mrb[0].mxu0
      %v999 = vpop.f32.mrb[0].mxu0
      %v1000 = vadd.f32 %v832, %v999
      %v1001 = vpop.f32.mrb[0].mxu0
      %1002 = vmatprep.mubr.bf16.mxu0 0
      %1003 = vmatmul.mubr.bf16.gmra.mrb[0].mxu0 %v871
      %v1004 = vpop.f32.mrb[0].mxu0
      %v1005 = vadd.f32 %v832, %v1004
      %v1006 = vpop.f32.mrb[0].mxu0
      %v1007 = vpop.f32.mrb[0].mxu0
      %v1008 = vadd.f32 %v832, %v1007
      %v1009 = vpop.f32.mrb[0].mxu0
      %1010 = vmatprep.mubr.bf16.mxu0 0
      %1011 = vmatmul.mubr.bf16.gmra.mrb[0].mxu0 %v872
      %v1012 = vpop.f32.mrb[0].mxu0
      %v1013 = vadd.f32 %v832, %v1012
      %v1014 = vpop.f32.mrb[0].mxu0
      %v1015 = vpop.f32.mrb[0].mxu0
      %v1016 = vadd.f32 %v832, %v1015
      %v1017 = vpop.f32.mrb[0].mxu0
      %1018 = vmatprep.mubr.bf16.mxu0 0
      %1019 = vmatmul.mubr.bf16.gmra.mrb[0].mxu0 %v873
      %v1020 = vpop.f32.mrb[0].mxu0
      %v1021 = vadd.f32 %v832, %v1020
      %v1022 = vpop.f32.mrb[0].mxu0
      %v1023 = vpop.f32.mrb[0].mxu0
      %v1024 = vadd.f32 %v832, %v1023
      %v1025 = vpop.f32.mrb[0].mxu0
      %1026 = vdwg.mxu0
      %v1027 = vpack.c.bf16 %v968, %v965
      %v1028 = vpack.c.bf16 %v976, %v973
      %v1029 = vpack.c.bf16 %v984, %v981
      %v1030 = vpack.c.bf16 %v992, %v989
      %v1031 = vpack.c.bf16 %v1000, %v997
      %v1032 = vpack.c.bf16 %v1008, %v1005
      %v1033 = vpack.c.bf16 %v1016, %v1013
      %v1034 = vpack.c.bf16 %v1024, %v1021
      %v1043 = vunpack.c.l.b16 %v1027
      %v1044 = vunpack.c.h.b16 %v1027
      %v1045 = vunpack.c.l.b16 %v1028
      %v1046 = vunpack.c.h.b16 %v1028
      %v1047 = vunpack.c.l.b16 %v1029
      %v1048 = vunpack.c.h.b16 %v1029
      %v1049 = vunpack.c.l.b16 %v1030
      %v1050 = vunpack.c.h.b16 %v1030
      %v1051 = vunpack.c.l.b16 %v1031
      %v1052 = vunpack.c.h.b16 %v1031
      %v1053 = vunpack.c.l.b16 %v1032
      %v1054 = vunpack.c.h.b16 %v1032
      %v1055 = vunpack.c.l.b16 %v1033
      %v1056 = vunpack.c.h.b16 %v1033
      %v1057 = vunpack.c.l.b16 %v1034
      %v1058 = vunpack.c.h.b16 %v1034
      %v1059 = vpack.c.b16 %v1043, %v1043
      %v1060 = vpack.c.b16 %v1044, %v1044
      %v1061 = vpack.c.b16 %v1045, %v1045
      %v1062 = vpack.c.b16 %v1046, %v1046
      %v1063 = vpack.c.b16 %v1047, %v1047
      %v1064 = vpack.c.b16 %v1048, %v1048
      %v1065 = vpack.c.b16 %v1049, %v1049
      %v1066 = vpack.c.b16 %v1050, %v1050
      %v1067 = vpack.c.b16 %v1051, %v1051
      %v1068 = vpack.c.b16 %v1052, %v1052
      %v1069 = vpack.c.b16 %v1053, %v1053
      %v1070 = vpack.c.b16 %v1054, %v1054
      %v1071 = vpack.c.b16 %v1055, %v1055
      %v1072 = vpack.c.b16 %v1056, %v1056
      %v1073 = vpack.c.b16 %v1057, %v1057
      %v1074 = vpack.c.b16 %v1058, %v1058
      %1091 = vst [vmem:[%s470] sm:$0xf] %v1059
      %1092 = vst [vmem:[%s470 + $0x4] sm:$0xf] %v1060
      %1093 = vst [vmem:[%s470 + $0x8] sm:$0xf] %v1061
      %1094 = vst [vmem:[%s470 + $0xc] sm:$0xf] %v1062
      %1095 = vst [vmem:[%s470 + $0x10] sm:$0xf] %v1063
      %1096 = vst [vmem:[%s470 + $0x14] sm:$0xf] %v1064
      %1097 = vst [vmem:[%s470 + $0x18] sm:$0xf] %v1065
      %1098 = vst [vmem:[%s470 + $0x1c] sm:$0xf] %v1066
      %1099 = vst [vmem:[%s470 + $0x20] sm:$0xf] %v1067
      %1100 = vst [vmem:[%s470 + $0x24] sm:$0xf] %v1068
      %1101 = vst [vmem:[%s470 + $0x28] sm:$0xf] %v1069
      %1102 = vst [vmem:[%s470 + $0x2c] sm:$0xf] %v1070
      %1103 = vst [vmem:[%s470 + $0x30] sm:$0xf] %v1071
      %1104 = vst [vmem:[%s470 + $0x34] sm:$0xf] %v1072
      %1105 = vst [vmem:[%s470 + $0x38] sm:$0xf] %v1073
      %1106 = vst [vmem:[%s470 + $0x3c] sm:$0xf] %v1074
      %v1107 = vld [vmem:[%s6] sm:$0xf]
      %v1108 = vld [vmem:[%s6 + $0x4] sm:$0xf]
      %v1109 = vld [vmem:[%s6 + $0x8] sm:$0xf]
      %v1110 = vld [vmem:[%s6 + $0xc] sm:$0xf]
      %v1111 = vld [vmem:[%s6 + $0x10] sm:$0xf]
      %v1112 = vld [vmem:[%s6 + $0x14] sm:$0xf]
      %v1113 = vld [vmem:[%s6 + $0x18] sm:$0xf]
      %v1114 = vld [vmem:[%s6 + $0x1c] sm:$0xf]
      %v1115 = vld [vmem:[%s6 + $0x20] sm:$0xf]
      %v1116 = vld [vmem:[%s6 + $0x24] sm:$0xf]
      %v1117 = vld [vmem:[%s6 + $0x28] sm:$0xf]
      %v1118 = vld [vmem:[%s6 + $0x2c] sm:$0xf]
      %v1119 = vld [vmem:[%s6 + $0x30] sm:$0xf]
      %v1120 = vld [vmem:[%s6 + $0x34] sm:$0xf]
      %v1121 = vld [vmem:[%s6 + $0x38] sm:$0xf]
      %v1122 = vld [vmem:[%s6 + $0x3c] sm:$0xf]
      %v1123 = vld [vmem:[%s7] sm:$0x1]
      %v1125 = vlaneseq
      %v1126 = vshrl.u32 %v1125, 7
      %v1127 = vsub.s32 0, %v1126
      %v1128 = vrot.slane %v1123, %v1127
      %v1146 = vunpack.c.l.b16 %v1107
      %v1147 = vunpack.c.l.b16 %v1108
      %v1148 = vunpack.c.l.b16 %v1109
      %v1149 = vunpack.c.l.b16 %v1110
      %v1150 = vunpack.c.l.b16 %v1111
      %v1151 = vunpack.c.l.b16 %v1112
      %v1152 = vunpack.c.l.b16 %v1113
      %v1153 = vunpack.c.l.b16 %v1114
      %v1154 = vunpack.c.l.b16 %v1115
      %v1155 = vunpack.c.l.b16 %v1116
      %v1156 = vunpack.c.l.b16 %v1117
      %v1157 = vunpack.c.l.b16 %v1118
      %v1158 = vunpack.c.l.b16 %v1119
      %v1159 = vunpack.c.l.b16 %v1120
      %v1160 = vunpack.c.l.b16 %v1121
      %v1161 = vunpack.c.l.b16 %v1122
      %v1162 = vpack.c.b16 %v1147, %v1146
      %v1163 = vpack.c.b16 %v1149, %v1148
      %v1164 = vpack.c.b16 %v1151, %v1150
      %v1165 = vpack.c.b16 %v1153, %v1152
      %v1166 = vpack.c.b16 %v1155, %v1154
      %v1167 = vpack.c.b16 %v1157, %v1156
      %v1168 = vpack.c.b16 %v1159, %v1158
      %v1169 = vpack.c.b16 %v1161, %v1160
      %1178 = vmatprep.subr.bf16.mxu0 0
      %1179 = vmatpush1.bf16.msra.mxu0 %v1162
      %1180 = vmatprep.subr.bf16.mxu0 0
      %1181 = vmatpush1.bf16.msra.mxu0 %v1163
      %1182 = vmatprep.subr.bf16.mxu0 0
      %1183 = vmatpush1.bf16.msra.mxu0 %v1164
      %1184 = vmatprep.subr.bf16.mxu0 0
      %1185 = vmatpush1.bf16.msra.mxu0 %v1165
      %1186 = vmatprep.subr.bf16.mxu0 0
      %1187 = vmatpush1.bf16.msra.mxu0 %v1166
      %1188 = vmatprep.subr.bf16.mxu0 0
      %1189 = vmatpush1.bf16.msra.mxu0 %v1167
      %1190 = vmatprep.subr.bf16.mxu0 0
      %1191 = vmatpush1.bf16.msra.mxu0 %v1168
      %1192 = vmatprep.subr.bf16.mxu0 0
      %1193 = vmatpush1.bf16.msra.mxu0 %v1169
      %1194 = vmatprep.subr.bf16.mxu0 0
      %1195 = vmatpush1.bf16.msra.mxu0 0
      %1196 = vmatprep.subr.bf16.mxu0 0
      %1197 = vmatpush1.bf16.msra.mxu0 0
      %1198 = vmatprep.subr.bf16.mxu0 0
      %1199 = vmatpush1.bf16.msra.mxu0 0
      %1200 = vmatprep.subr.bf16.mxu0 0
      %1201 = vmatpush1.bf16.msra.mxu0 0
      %1202 = vmatprep.subr.bf16.mxu0 0
      %1203 = vmatpush1.bf16.msra.mxu0 0
      %1204 = vmatprep.subr.bf16.mxu0 0
      %1205 = vmatpush1.bf16.msra.mxu0 0
      %1206 = vmatprep.subr.bf16.mxu0 0
      %1207 = vmatpush1.bf16.msra.mxu0 0
      %1208 = vmatprep.subr.bf16.mxu0 0
      %1209 = vmatpush1.bf16.msra.mxu0 0
      %1210 = vmatprep.mubr.bf16.mxu0 0
      %1211 = vmatmul.mubr.bf16.gmra.mrb[0].mxu0 %v866
      %v1212 = vpop.f32.mrb[0].mxu0
      %v1213 = vadd.f32 %v1128, %v1212
      %v1214 = vpop.f32.mrb[0].mxu0
      %v1215 = vpop.f32.mrb[0].mxu0
      %v1216 = vadd.f32 %v1128, %v1215
      %v1217 = vpop.f32.mrb[0].mxu0
      %1218 = vmatprep.mubr.bf16.mxu0 0
      %1219 = vmatmul.mubr.bf16.gmra.mrb[0].mxu0 %v867
      %v1220 = vpop.f32.mrb[0].mxu0
      %v1221 = vadd.f32 %v1128, %v1220
      %v1222 = vpop.f32.mrb[0].mxu0
      %v1223 = vpop.f32.mrb[0].mxu0
      %v1224 = vadd.f32 %v1128, %v1223
      %v1225 = vpop.f32.mrb[0].mxu0
      %1226 = vmatprep.mubr.bf16.mxu0 0
      %1227 = vmatmul.mubr.bf16.gmra.mrb[0].mxu0 %v868
      %v1228 = vpop.f32.mrb[0].mxu0
      %v1229 = vadd.f32 %v1128, %v1228
      %v1230 = vpop.f32.mrb[0].mxu0
      %v1231 = vpop.f32.mrb[0].mxu0
      %v1232 = vadd.f32 %v1128, %v1231
      %v1233 = vpop.f32.mrb[0].mxu0
      %1234 = vmatprep.mubr.bf16.mxu0 0
      %1235 = vmatmul.mubr.bf16.gmra.mrb[0].mxu0 %v869
      %v1236 = vpop.f32.mrb[0].mxu0
      %v1237 = vadd.f32 %v1128, %v1236
      %v1238 = vpop.f32.mrb[0].mxu0
      %v1239 = vpop.f32.mrb[0].mxu0
      %v1240 = vadd.f32 %v1128, %v1239
      %v1241 = vpop.f32.mrb[0].mxu0
      %1242 = vmatprep.mubr.bf16.mxu0 0
      %1243 = vmatmul.mubr.bf16.gmra.mrb[0].mxu0 %v870
      %v1244 = vpop.f32.mrb[0].mxu0
      %v1245 = vadd.f32 %v1128, %v1244
      %v1246 = vpop.f32.mrb[0].mxu0
      %v1247 = vpop.f32.mrb[0].mxu0
      %v1248 = vadd.f32 %v1128, %v1247
      %v1249 = vpop.f32.mrb[0].mxu0
      %1250 = vmatprep.mubr.bf16.mxu0 0
      %1251 = vmatmul.mubr.bf16.gmra.mrb[0].mxu0 %v871
      %v1252 = vpop.f32.mrb[0].mxu0
      %v1253 = vadd.f32 %v1128, %v1252
      %v1254 = vpop.f32.mrb[0].mxu0
      %v1255 = vpop.f32.mrb[0].mxu0
      %v1256 = vadd.f32 %v1128, %v1255
      %v1257 = vpop.f32.mrb[0].mxu0
      %1258 = vmatprep.mubr.bf16.mxu0 0
      %1259 = vmatmul.mubr.bf16.gmra.mrb[0].mxu0 %v872
      %v1260 = vpop.f32.mrb[0].mxu0
      %v1261 = vadd.f32 %v1128, %v1260
      %v1262 = vpop.f32.mrb[0].mxu0
      %v1263 = vpop.f32.mrb[0].mxu0
      %v1264 = vadd.f32 %v1128, %v1263
      %v1265 = vpop.f32.mrb[0].mxu0
      %1266 = vmatprep.mubr.bf16.mxu0 0
      %1267 = vmatmul.mubr.bf16.gmra.mrb[0].mxu0 %v873
      %v1268 = vpop.f32.mrb[0].mxu0
      %v1269 = vadd.f32 %v1128, %v1268
      %v1270 = vpop.f32.mrb[0].mxu0
      %v1271 = vpop.f32.mrb[0].mxu0
      %v1272 = vadd.f32 %v1128, %v1271
      %v1273 = vpop.f32.mrb[0].mxu0
      %1274 = vdwg.mxu0
      %v1275 = vpack.c.bf16 %v1216, %v1213
      %v1276 = vpack.c.bf16 %v1224, %v1221
      %v1277 = vpack.c.bf16 %v1232, %v1229
      %v1278 = vpack.c.bf16 %v1240, %v1237
      %v1279 = vpack.c.bf16 %v1248, %v1245
      %v1280 = vpack.c.bf16 %v1256, %v1253
      %v1281 = vpack.c.bf16 %v1264, %v1261
      %v1282 = vpack.c.bf16 %v1272, %v1269
      %v1291 = vunpack.c.l.b16 %v1275
      %v1292 = vunpack.c.h.b16 %v1275
      %v1293 = vunpack.c.l.b16 %v1276
      %v1294 = vunpack.c.h.b16 %v1276
      %v1295 = vunpack.c.l.b16 %v1277
      %v1296 = vunpack.c.h.b16 %v1277
      %v1297 = vunpack.c.l.b16 %v1278
      %v1298 = vunpack.c.h.b16 %v1278
      %v1299 = vunpack.c.l.b16 %v1279
      %v1300 = vunpack.c.h.b16 %v1279
      %v1301 = vunpack.c.l.b16 %v1280
      %v1302 = vunpack.c.h.b16 %v1280
      %v1303 = vunpack.c.l.b16 %v1281
      %v1304 = vunpack.c.h.b16 %v1281
      %v1305 = vunpack.c.l.b16 %v1282
      %v1306 = vunpack.c.h.b16 %v1282
      %v1307 = vpack.c.b16 %v1291, %v1291
      %v1308 = vpack.c.b16 %v1292, %v1292
      %v1309 = vpack.c.b16 %v1293, %v1293
      %v1310 = vpack.c.b16 %v1294, %v1294
      %v1311 = vpack.c.b16 %v1295, %v1295
      %v1312 = vpack.c.b16 %v1296, %v1296
      %v1313 = vpack.c.b16 %v1297, %v1297
      %v1314 = vpack.c.b16 %v1298, %v1298
      %v1315 = vpack.c.b16 %v1299, %v1299
      %v1316 = vpack.c.b16 %v1300, %v1300
      %v1317 = vpack.c.b16 %v1301, %v1301
      %v1318 = vpack.c.b16 %v1302, %v1302
      %v1319 = vpack.c.b16 %v1303, %v1303
      %v1320 = vpack.c.b16 %v1304, %v1304
      %v1321 = vpack.c.b16 %v1305, %v1305
      %v1322 = vpack.c.b16 %v1306, %v1306
      %1339 = vst [vmem:[%s480] sm:$0xf] %v1307
      %1340 = vst [vmem:[%s480 + $0x4] sm:$0xf] %v1308
      %1341 = vst [vmem:[%s480 + $0x8] sm:$0xf] %v1309
      %1342 = vst [vmem:[%s480 + $0xc] sm:$0xf] %v1310
      %1343 = vst [vmem:[%s480 + $0x10] sm:$0xf] %v1311
      %1344 = vst [vmem:[%s480 + $0x14] sm:$0xf] %v1312
      %1345 = vst [vmem:[%s480 + $0x18] sm:$0xf] %v1313
      %1346 = vst [vmem:[%s480 + $0x1c] sm:$0xf] %v1314
      %1347 = vst [vmem:[%s480 + $0x20] sm:$0xf] %v1315
      %1348 = vst [vmem:[%s480 + $0x24] sm:$0xf] %v1316
      %1349 = vst [vmem:[%s480 + $0x28] sm:$0xf] %v1317
      %1350 = vst [vmem:[%s480 + $0x2c] sm:$0xf] %v1318
      %1351 = vst [vmem:[%s480 + $0x30] sm:$0xf] %v1319
      %1352 = vst [vmem:[%s480 + $0x34] sm:$0xf] %v1320
      %1353 = vst [vmem:[%s480 + $0x38] sm:$0xf] %v1321
      %1354 = vst [vmem:[%s480 + $0x3c] sm:$0xf] %v1322
      %s1355 = smul.u32 16, %s27
      %p1356 = scmp.lt.s32.totalorder %s26, 1
      %s1357 = scalar_select %p1356, %s26, 1
      %p1358 = scmp.lt.s32.totalorder %s1355, 15
      %s1359 = scalar_select %p1358, %s1355, 15
      %s1360 = smul.addr %s1357, 16
      %s1361 = sadd.s32 %s1359, %s1360
      %s1362 = smul.addr %s1361, 4
      %s1363 = scalar_lea.vmem %s8, %s1362
      %s1364 = smul.u32 16, %s27
      %p1365 = scmp.lt.s32.totalorder %s26, 1
      %s1366 = scalar_select %p1365, %s26, 1
      %p1367 = scmp.lt.s32.totalorder %s1364, 15
      %s1368 = scalar_select %p1367, %s1364, 15
      %s1369 = smul.addr %s1366, 16
      %s1370 = sadd.s32 %s1368, %s1369
      %s1371 = smul.addr %s1370, 4
      %s1372 = scalar_lea.vmem %s9, %s1371
      %s1373 = smul.u32 16, %s27
      %p1374 = scmp.lt.s32.totalorder %s26, 1
      %s1375 = scalar_select %p1374, %s26, 1
      %p1376 = scmp.lt.s32.totalorder %s1373, 15
      %s1377 = scalar_select %p1376, %s1373, 15
      %s1378 = smul.addr %s1375, 16
      %s1379 = sadd.s32 %s1377, %s1378
      %s1380 = smul.addr %s1379, 4
      %s1381 = scalar_lea.vmem %s10, %s1380
      // Predicated region
      $region53: #{attention_fuse_forward.2} parent=51 // pred_check
        %p1382 = pneg %p236
      $region54: #{attention_fuse_forward.2} parent=51 // pred_check_branch
        %1384 = sbr.rel (%p1382) target = $region56
      $region55: #{attention_fuse_forward.2} parent=51 // pred_region
        %s1385 = smul.u32 16, %s27
      $region56: #{attention_fuse_forward.2} parent=51 // pred_fallthru
        _
      // Predicated region
      $region57: #{attention_fuse_forward.2} parent=51 // pred_check
        %p1386 = pneg %p264
      $region58: #{attention_fuse_forward.2} parent=51 // pred_check_branch
        %1388 = sbr.rel (%p1386) target = $region60
      $region59: #{attention_fuse_forward.2} parent=51 // pred_region
        %s1389 = smul.u32 16, %s27
      $region60: #{attention_fuse_forward.2} parent=51 // pred_fallthru
        _
      // Predicated region
      $region61: #{attention_fuse_forward.2} parent=51 // pred_check
        %p1390 = pneg %p292
      $region62: #{attention_fuse_forward.2} parent=51 // pred_check_branch
        %1392 = sbr.rel (%p1390) target = $region64
      $region63: #{attention_fuse_forward.2} parent=51 // pred_region
        %s1393 = smul.u32 16, %s27
      $region64: #{attention_fuse_forward.2} parent=51 // pred_fallthru
        _
    $region52: #{attention_fuse_forward.2} parent=5 // pred_fallthru
      _
    %p1394 = scmp.le.s32.totalorder 2, %s17
    // Predicated region
    $region65: #{attention_fuse_forward.2} parent=5 // pred_check
      %p1395 = pneg %p1394
    $region66: #{attention_fuse_forward.2} parent=5 // pred_check_branch
      %1397 = sbr.rel (%p1395) target = $region68
    $region67: #{attention_fuse_forward.2} parent=5 // pred_region
      %s1398 = ssub.s32 %s17, 2
      // Predicated region
      $region69: #{attention_fuse_forward.2} parent=67 // pred_check
        %p1399 = pneg %p242
      $region70: #{attention_fuse_forward.2} parent=67 // pred_check_branch
        %1401 = sbr.rel (%p1399) target = $region72
      $region71: #{attention_fuse_forward.2} parent=67 // pred_region
        %s1402 = smul.u32 16, %s29
        %p1403 = scmp.lt.s32.totalorder %s28, 1
        %s1404 = scalar_select %p1403, %s28, 1
        %p1405 = scmp.lt.s32.totalorder %s1402, 15
        %s1406 = scalar_select %p1405, %s1402, 15
        %s1407 = smul.addr %s1404, 16
        %s1408 = sadd.s32 %s1406, %s1407
        %s1409 = smul.addr %s1408, 4
        %s1410 = scalar_lea.vmem %s8, %s1409
      $region72: #{attention_fuse_forward.2} parent=67 // pred_fallthru
        _
      // Predicated region
      $region73: #{attention_fuse_forward.2} parent=67 // pred_check
        %p1411 = pneg %p270
      $region74: #{attention_fuse_forward.2} parent=67 // pred_check_branch
        %1413 = sbr.rel (%p1411) target = $region76
      $region75: #{attention_fuse_forward.2} parent=67 // pred_region
        %s1414 = smul.u32 16, %s29
        %p1415 = scmp.lt.s32.totalorder %s28, 1
        %s1416 = scalar_select %p1415, %s28, 1
        %p1417 = scmp.lt.s32.totalorder %s1414, 15
        %s1418 = scalar_select %p1417, %s1414, 15
        %s1419 = smul.addr %s1416, 16
        %s1420 = sadd.s32 %s1418, %s1419
        %s1421 = smul.addr %s1420, 4
        %s1422 = scalar_lea.vmem %s9, %s1421
      $region76: #{attention_fuse_forward.2} parent=67 // pred_fallthru
        _
      // Predicated region
      $region77: #{attention_fuse_forward.2} parent=67 // pred_check
        %p1423 = pneg %p298
      $region78: #{attention_fuse_forward.2} parent=67 // pred_check_branch
        %1425 = sbr.rel (%p1423) target = $region80
      $region79: #{attention_fuse_forward.2} parent=67 // pred_region
        %s1426 = smul.u32 16, %s29
        %p1427 = scmp.lt.s32.totalorder %s28, 1
        %s1428 = scalar_select %p1427, %s28, 1
        %p1429 = scmp.lt.s32.totalorder %s1426, 15
        %s1430 = scalar_select %p1429, %s1426, 15
        %s1431 = smul.addr %s1428, 16
        %s1432 = sadd.s32 %s1430, %s1431
        %s1433 = smul.addr %s1432, 4
        %s1434 = scalar_lea.vmem %s10, %s1433
      $region80: #{attention_fuse_forward.2} parent=67 // pred_fallthru
        _
    $region68: #{attention_fuse_forward.2} parent=5 // pred_fallthru
      _
  $region6: #{attention_fuse_forward.2} parent=0 // loop_footer
    %s21 = sadd.s32 1, %s17
  $region7: #{attention_fuse_forward.2} parent=0 // loop_footer_branch
    %16 = sbr.rel target = $region3
  $region8: #{attention_fuse_forward.2} parent=0 // loop_exit
    _

</llo_original>
